<compile_context>
chip_gen: v5e
topology: v5e:2x2
jax: 0.10.0
libtpu: 0.0.40
codegen_flags: <defaults>
</compile_context>

<pallas_src>
import numpy as np
import jax
import jax.numpy as jnp
from jax.experimental import pallas as pl
from jax.experimental.pallas import tpu as pltpu

TEMPERATURE = 0.07
INV_TEMP = 1.0 / TEMPERATURE
MAX_ANCHOR = 512
IGNORE_LB = 255
TN = 512       # anchor-row tile size: whole MAX_ANCHOR set in one grid step
LANE = 128     # lane width / MXU-friendly padding granule


# ----------------------------- Pallas kernel ------------------------------ #
def _contrast_kernel(anchors_ref, a_lab_ref, protos_t_ref, p_lab_ref, loss_ref):
    # anchors_ref  : (TN, C_pad)    f32 anchor embeddings (zero-padded rows/cols)
    # a_lab_ref    : (TN, 1)        int32 anchor class labels (-1 for padding)
    # protos_t_ref : (C_pad, P_pad) f32 prototypes, pre-transposed (zero-padded)
    # p_lab_ref    : (1, P_pad)     int32 prototype class labels (-1 for padding)
    # loss_ref     : (1, 1)         f32 SMEM: running sum of per-anchor losses
    a = anchors_ref[...]
    pt = protos_t_ref[...]
    a_lab = a_lab_ref[...]
    p_lab = p_lab_ref[...]

    # anchor_dot_contrast = (anchors @ protos.T) / temperature   (MXU, f32 acc)
    adc = jnp.dot(a, pt, preferred_element_type=jnp.float32) * INV_TEMP  # (TN, P)

    valid_p = p_lab >= 0                                        # (1, P)  real proto cols
    pos = jnp.logical_and(a_lab == p_lab, valid_p)              # (TN, P) same-class & real
    pos_f = pos.astype(jnp.float32)

    neg_big = jnp.float32(-1e30)
    adc_v = jnp.where(valid_p, adc, neg_big)                    # mask padded columns
    row_max = jnp.max(adc_v, axis=1, keepdims=True)             # (TN, 1) max over real cols
    logits = adc_v - row_max                                    # padded cols stay ~-1e30
    e = jnp.exp(logits)                                         # padded cols -> 0, no overflow

    sum_e = jnp.sum(e, axis=1, keepdims=True)                   # (TN, 1) over real cols
    pos_e = jnp.sum(e * pos_f, axis=1, keepdims=True)           # (TN, 1) positive part
    neg_sum = sum_e - pos_e                                     # (TN, 1) sum over negatives

    # log_prob only matters on positive columns, where e == exp(logits):
    #   log_prob = logits - log(exp(logits) + neg_sum)   (identical to the torch formula)
    log_prob_pos = jnp.where(pos, logits - jnp.log(e + neg_sum), 0.0)
    pos_cnt = jnp.sum(pos_f, axis=1, keepdims=True)             # (TN, 1)
    inv_cnt = pl.reciprocal(jnp.maximum(pos_cnt, 1.0), approx=True)
    mean_lpp = jnp.sum(log_prob_pos, axis=1, keepdims=True) * inv_cnt
    row_loss = -mean_lpp                                        # (TN, 1)

    # real anchors (label >= 0; padding is -1) that actually have positives
    valid_a = jnp.logical_and(a_lab >= 0, pos_cnt > 0.0)        # (TN, 1)
    tile_sum = jnp.sum(jnp.where(valid_a, row_loss, 0.0))

    @pl.when(pl.program_id(0) == 0)
    def _():
        loss_ref[0, 0] = 0.0
    loss_ref[0, 0] += tile_sum


@jax.jit
def contrast_loss_pallas(anchors, anchor_labels, protos, proto_labels):
    """anchors: (N, C) f32, anchor_labels: (N,), protos: (P, C) f32, proto_labels: (P,)."""
    n, c = anchors.shape
    p = protos.shape[0]
    n_pad = ((n + TN - 1) // TN) * TN
    p_pad = max(((p + LANE - 1) // LANE) * LANE, LANE)
    c_pad = max(((c + LANE - 1) // LANE) * LANE, LANE)
    n_tiles = n_pad // TN   # == 1 for the module's MAX_ANCHOR = 512 cap

    anchors_p = jnp.zeros((n_pad, c_pad), jnp.float32).at[:n, :c].set(
        anchors.astype(jnp.float32))
    a_lab_p = jnp.full((n_pad, 1), -1, jnp.int32).at[:n, 0].set(
        anchor_labels.astype(jnp.int32))
    # pre-transposed prototypes (C_pad, P_pad): lane-dense, no in-kernel transpose
    protos_t = jnp.zeros((c_pad, p_pad), jnp.float32).at[:c, :p].set(
        protos.T.astype(jnp.float32))
    p_lab_p = jnp.full((1, p_pad), -1, jnp.int32).at[0, :p].set(
        proto_labels.astype(jnp.int32))

    loss_sum = pl.pallas_call(
        _contrast_kernel,
        out_shape=jax.ShapeDtypeStruct((1, 1), jnp.float32),
        grid_spec=pltpu.PrefetchScalarGridSpec(
            num_scalar_prefetch=0,
            grid=(n_tiles,),
            in_specs=[
                pl.BlockSpec((TN, c_pad), lambda i: (i, 0)),      # anchor tile
                pl.BlockSpec((TN, 1), lambda i: (i, 0)),          # anchor labels
                pl.BlockSpec((c_pad, p_pad), lambda i: (0, 0)),   # all prototypes (C, P)
                pl.BlockSpec((1, p_pad), lambda i: (0, 0)),       # prototype labels
            ],
            out_specs=pl.BlockSpec((1, 1), lambda i: (0, 0),
                                   memory_space=pltpu.MemorySpace.SMEM),
        ),
        compiler_params=pltpu.CompilerParams(dimension_semantics=("arbitrary",)),
    )(anchors_p, a_lab_p, protos_t, p_lab_p)

    # mean over all real (unpadded) anchors, matching `loss.mean()` in torch
    return loss_sum[0, 0] / jnp.float32(n)


# ------------------------------ host glue --------------------------------- #
# TODO(synk): anchor sampling / masked_select are data-dependent gathers with
# dynamic result sizes (randperm + boolean select); kept as host-side glue.
def anchor_sampling_np(embs, labels, rng):
    b, c, h, w = embs.shape
    embs_flat = np.transpose(embs, (0, 2, 3, 1)).reshape(-1, c)
    labels_flat = labels.reshape(-1)
    classes = np.unique(labels_flat)
    classes_nz = classes[classes != 0]
    if len(classes_nz) == 0:
        return None, None
    num_p_c = MAX_ANCHOR // len(classes_nz)
    sampled, sampled_lab = [], []
    for cls in classes_nz:
        idx = np.nonzero(labels_flat == cls)[0]
        if len(idx) > num_p_c:
            perm = rng.permutation(len(idx))[:num_p_c]
            idx = idx[perm]
        sampled.append(embs_flat[idx])
        sampled_lab.append(np.full(len(idx), cls, dtype=np.float32))
    return np.concatenate(sampled, 0), np.concatenate(sampled_lab, 0)


def select_protos_np(proto_mem, proto_mask):
    C_, km_, c_ = proto_mem.shape
    proto_labels = np.repeat(np.arange(C_), km_).astype(np.float32)
    proto_flat = proto_mem.reshape(-1, c_)
    sel = proto_mask.reshape(-1).astype(bool)
    return proto_flat[sel], proto_labels[sel]


def reference_loss_np(anchors, anchor_labels, protos, proto_labels):
    # faithful NumPy transcription of the PyTorch forward
    adc = (anchors.astype(np.float64) @ protos.astype(np.float64).T) / TEMPERATURE
    mask = (anchor_labels[:, None] == proto_labels[None, :]).astype(np.float64)
    logits_max = adc.max(1, keepdims=True)
    logits = adc - logits_max
    neg_mask = 1.0 - mask
    neg_logits = (np.exp(logits) * neg_mask).sum(1, keepdims=True)
    exp_logits = np.exp(logits) * mask
    log_prob = logits - np.log(exp_logits + neg_logits)
    mean_log_prob_pos = (mask * log_prob).sum(1) / mask.sum(1)
    return float(-(mean_log_prob_pos.mean()))


# --------------------------------- main ------------------------------------ #
if __name__ == "__main__":
    key = jax.random.PRNGKey(0)
    k_e, k_l, k_p, k_m = jax.random.split(key, 4)

    B, C, H, W = 2, 32, 16, 16        # embs: NCHW like PyTorch
    NCLS, KM = 4, 8                   # proto_mem: (num_classes, k_protos, C)

    # L2-normalized embeddings / prototypes (well-conditioned contrastive inputs)
    embs = jax.random.normal(k_e, (B, C, H, W), jnp.float32)
    embs = embs / jnp.linalg.norm(embs, axis=1, keepdims=True)
    labels = jax.random.randint(k_l, (B, H, W), 0, NCLS)
    proto_mem = jax.random.normal(k_p, (NCLS, KM, C), jnp.float32)
    proto_mem = proto_mem / jnp.linalg.norm(proto_mem, axis=-1, keepdims=True)
    proto_mask = jax.random.bernoulli(k_m, 0.7, (NCLS, KM))
    proto_mask = proto_mask.at[:, 0].set(True)  # every class keeps >=1 prototype

    embs_np = np.asarray(embs)
    labels_np = np.asarray(labels)
    proto_mem_np = np.asarray(proto_mem)
    proto_mask_np = np.asarray(proto_mask)

    rng = np.random.default_rng(0)
    anchors_np, anchor_labels_np = anchor_sampling_np(embs_np, labels_np, rng)
    protos_np, proto_labels_np = select_protos_np(proto_mem_np, proto_mask_np)

    if anchors_np is None:
        loss = jnp.float32(0.0)
    else:
        loss = contrast_loss_pallas(
            jnp.asarray(anchors_np),
            jnp.asarray(anchor_labels_np),
            jnp.asarray(protos_np),
            jnp.asarray(proto_labels_np),
        )
    loss = jax.block_until_ready(loss)

    ref = reference_loss_np(anchors_np, anchor_labels_np, protos_np, proto_labels_np)
    np.testing.assert_allclose(float(loss), ref, rtol=1e-2, atol=1e-2)
    print("KERNEL_OK")
</pallas_src>

<mosaic_0001>
module attributes {stable_mosaic.version = 11 : i64} {
  func.func @_contrast_kernel(%arg0: i32, %arg1: memref<512x128xf32, #tpu.memory_space<vmem>>, %arg2: memref<512x1xi32, #tpu.memory_space<vmem>>, %arg3: memref<128x128xf32, #tpu.memory_space<vmem>>, %arg4: memref<1x128xi32, #tpu.memory_space<vmem>>, %arg5: memref<1x1xf32, #tpu.memory_space<smem>>) attributes {dimension_semantics = [#tpu.dimension_semantics<arbitrary>], iteration_bounds = array<i64: 1>, scalar_prefetch = 0 : i64, scratch_operands = 0 : i64, tpu.core_type = #tpu.core_type<tc>, window_params = [{transform_indices = @transform_0, window_bounds = array<i64: 512, 128>}, {transform_indices = @transform_1, window_bounds = array<i64: 512, 1>}, {pipeline_mode = #tpu.pipeline_mode<synchronous>, transform_indices = @transform_2, window_bounds = array<i64: 128, 128>}, {pipeline_mode = #tpu.pipeline_mode<synchronous>, transform_indices = @transform_3, window_bounds = array<i64: 1, 128>}, {transform_indices = @transform_4, window_bounds = array<i64: 1, 1>}]} {
    %c0 = arith.constant 0 : index
    %c0_0 = arith.constant 0 : index
    %0 = vector.load %arg1[%c0, %c0_0] : memref<512x128xf32, #tpu.memory_space<vmem>>, vector<512x128xf32>
    %c0_1 = arith.constant 0 : index
    %c0_2 = arith.constant 0 : index
    %1 = vector.load %arg3[%c0_1, %c0_2] : memref<128x128xf32, #tpu.memory_space<vmem>>, vector<128x128xf32>
    %c0_3 = arith.constant 0 : index
    %c0_4 = arith.constant 0 : index
    %2 = vector.load %arg2[%c0_3, %c0_4] : memref<512x1xi32, #tpu.memory_space<vmem>>, vector<512x1xi32>
    %c0_5 = arith.constant 0 : index
    %c0_6 = arith.constant 0 : index
    %3 = vector.load %arg4[%c0_5, %c0_6] : memref<1x128xi32, #tpu.memory_space<vmem>>, vector<1x128xi32>
    %cst = arith.constant dense<0.000000e+00> : vector<512x128xf32>
    %4 = tpu.matmul %0, %1, %cst {dimension_numbers = #tpu.dot_dimension_numbers<[1], [0], [0], [1], [0, 0, 1, 1], [], []>} : vector<512x128xf32>, vector<128x128xf32>, vector<512x128xf32> -> vector<512x128xf32>
    %cst_7 = arith.constant 14.2857141 : f32
    %5 = vector.broadcast %cst_7 : f32 to vector<512x128xf32>
    %6 = arith.mulf %4, %5 : vector<512x128xf32>
    %c0_i32 = arith.constant 0 : i32
    %7 = vector.broadcast %c0_i32 : i32 to vector<1x128xi32>
    %8 = arith.cmpi sge, %3, %7 : vector<1x128xi32>
    %9 = vector.broadcast %2 : vector<512x1xi32> to vector<512x128xi32>
    %10 = vector.broadcast %3 : vector<1x128xi32> to vector<512x128xi32>
    %11 = arith.cmpi eq, %9, %10 : vector<512x128xi32>
    %12 = vector.broadcast %8 : vector<1x128xi1> to vector<512x128xi1>
    %13 = arith.andi %11, %12 : vector<512x128xi1>
    %14 = arith.extui %13 : vector<512x128xi1> to vector<512x128xi32>
    %15 = arith.sitofp %14 : vector<512x128xi32> to vector<512x128xf32>
    %cst_8 = arith.constant -1.000000e+30 : f32
    %16 = vector.shape_cast %8 : vector<1x128xi1> to vector<1x128xi1>
    %17 = vector.broadcast %16 : vector<1x128xi1> to vector<512x128xi1>
    %18 = vector.broadcast %cst_8 : f32 to vector<512x128xf32>
    %19 = arith.select %17, %6, %18 : vector<512x128xi1>, vector<512x128xf32>
    %cst_9 = arith.constant dense<0xFF800000> : vector<512xf32>
    %20 = vector.multi_reduction <maximumf>, %19, %cst_9 [1] : vector<512x128xf32> to vector<512xf32>
    %21 = vector.shape_cast %20 : vector<512xf32> to vector<512x1xf32>
    %22 = vector.broadcast %21 : vector<512x1xf32> to vector<512x128xf32>
    %23 = arith.subf %19, %22 : vector<512x128xf32>
    %24 = math.exp %23 : vector<512x128xf32>
    %cst_10 = arith.constant dense<0.000000e+00> : vector<512xf32>
    %25 = vector.multi_reduction <add>, %24, %cst_10 [1] : vector<512x128xf32> to vector<512xf32>
    %26 = vector.shape_cast %25 : vector<512xf32> to vector<512x1xf32>
    %27 = arith.mulf %24, %15 : vector<512x128xf32>
    %cst_11 = arith.constant dense<0.000000e+00> : vector<512xf32>
    %28 = vector.multi_reduction <add>, %27, %cst_11 [1] : vector<512x128xf32> to vector<512xf32>
    %29 = vector.shape_cast %28 : vector<512xf32> to vector<512x1xf32>
    %30 = arith.subf %26, %29 : vector<512x1xf32>
    %31 = vector.broadcast %30 : vector<512x1xf32> to vector<512x128xf32>
    %32 = arith.addf %24, %31 : vector<512x128xf32>
    %33 = math.log %32 : vector<512x128xf32>
    %34 = arith.subf %23, %33 : vector<512x128xf32>
    %cst_12 = arith.constant 0.000000e+00 : f32
    %35 = vector.broadcast %cst_12 : f32 to vector<512x128xf32>
    %36 = arith.select %13, %34, %35 : vector<512x128xi1>, vector<512x128xf32>
    %cst_13 = arith.constant dense<0.000000e+00> : vector<512xf32>
    %37 = vector.multi_reduction <add>, %15, %cst_13 [1] : vector<512x128xf32> to vector<512xf32>
    %38 = vector.shape_cast %37 : vector<512xf32> to vector<512x1xf32>
    %cst_14 = arith.constant 1.000000e+00 : f32
    %39 = vector.broadcast %cst_14 : f32 to vector<512x1xf32>
    %40 = arith.maximumf %38, %39 : vector<512x1xf32>
    %41 = tpu.reciprocal %40 {approx = true} : vector<512x1xf32> -> vector<512x1xf32>
    %cst_15 = arith.constant dense<0.000000e+00> : vector<512xf32>
    %42 = vector.multi_reduction <add>, %36, %cst_15 [1] : vector<512x128xf32> to vector<512xf32>
    %43 = vector.shape_cast %42 : vector<512xf32> to vector<512x1xf32>
    %44 = arith.mulf %43, %41 : vector<512x1xf32>
    %cst_16 = arith.constant 0.000000e+00 : f32
    %45 = vector.broadcast %cst_16 : f32 to vector<512x1xf32>
    %46 = arith.subf %45, %44 : vector<512x1xf32>
    %c0_i32_17 = arith.constant 0 : i32
    %47 = vector.broadcast %c0_i32_17 : i32 to vector<512x1xi32>
    %48 = arith.cmpi sge, %2, %47 : vector<512x1xi32>
    %cst_18 = arith.constant 0.000000e+00 : f32
    %49 = vector.broadcast %cst_18 : f32 to vector<512x1xf32>
    %50 = arith.cmpf ogt, %38, %49 : vector<512x1xf32>
    %51 = arith.andi %48, %50 : vector<512x1xi1>
    %cst_19 = arith.constant 0.000000e+00 : f32
    %52 = vector.broadcast %cst_19 : f32 to vector<512x1xf32>
    %53 = arith.select %51, %46, %52 : vector<512x1xi1>, vector<512x1xf32>
    %54 = vector.shape_cast %53 : vector<512x1xf32> to vector<1x512x1xf32>
    %cst_20 = arith.constant dense<0.000000e+00> : vector<1xf32>
    %55 = vector.multi_reduction <add>, %54, %cst_20 [1, 2] : vector<1x512x1xf32> to vector<1xf32>
    %56 = vector.shape_cast %55 : vector<1xf32> to vector<1x1x1xf32>
    %57 = vector.extract %56[0, 0, 0] : f32 from vector<1x1x1xf32>
    %c0_i32_21 = arith.constant 0 : i32
    %58 = arith.cmpi eq, %arg0, %c0_i32_21 : i32
    %59 = arith.extui %58 : i1 to i32
    %c0_i32_22 = arith.constant 0 : i32
    %60 = arith.cmpi ne, %59, %c0_i32_22 : i32
    scf.if %60 {
      %cst_27 = arith.constant 0.000000e+00 : f32
      %c0_28 = arith.constant 0 : index
      %c0_29 = arith.constant 0 : index
      %64 = memref.load %arg5[%c0_28, %c0_29] : memref<1x1xf32, #tpu.memory_space<smem>>
      memref.store %cst_27, %arg5[%c0_28, %c0_29] : memref<1x1xf32, #tpu.memory_space<smem>>
    } else {
    }
    %c0_23 = arith.constant 0 : index
    %c0_24 = arith.constant 0 : index
    %61 = memref.load %arg5[%c0_23, %c0_24] : memref<1x1xf32, #tpu.memory_space<smem>>
    %62 = arith.addf %61, %57 : f32
    %c0_25 = arith.constant 0 : index
    %c0_26 = arith.constant 0 : index
    %63 = memref.load %arg5[%c0_25, %c0_26] : memref<1x1xf32, #tpu.memory_space<smem>>
    memref.store %62, %arg5[%c0_25, %c0_26] : memref<1x1xf32, #tpu.memory_space<smem>>
    return
  }
  func.func @transform_0(%arg0: i32) -> (i32, i32) {
    %c0_i32 = arith.constant 0 : i32
    %c0_i32_0 = arith.constant 0 : i32
    return %arg0, %c0_i32 : i32, i32
  }
  func.func @transform_1(%arg0: i32) -> (i32, i32) {
    %c0_i32 = arith.constant 0 : i32
    %c0_i32_0 = arith.constant 0 : i32
    return %arg0, %c0_i32 : i32, i32
  }
  func.func @transform_2(%arg0: i32) -> (i32, i32) {
    %c0_i32 = arith.constant 0 : i32
    %c0_i32_0 = arith.constant 0 : i32
    %c0_i32_1 = arith.constant 0 : i32
    return %c0_i32, %c0_i32_0 : i32, i32
  }
  func.func @transform_3(%arg0: i32) -> (i32, i32) {
    %c0_i32 = arith.constant 0 : i32
    %c0_i32_0 = arith.constant 0 : i32
    %c0_i32_1 = arith.constant 0 : i32
    return %c0_i32, %c0_i32_0 : i32, i32
  }
  func.func @transform_4(%arg0: i32) -> (i32, i32) {
    %c0_i32 = arith.constant 0 : i32
    %c0_i32_0 = arith.constant 0 : i32
    %c0_i32_1 = arith.constant 0 : i32
    return %c0_i32, %c0_i32_0 : i32, i32
  }
}

</mosaic_0001>

<llo_original>
// kernel: contrast_loss_pallas.1
$region0: #{contrast_loss_pallas.1}
  #allocation0 [shape = 'u32[]', space=smem, size = 0x4, offset = 0x4, fixed_abs, tag = 'smem constant byte address 0x4 - core index']
  #allocation1 [shape = 'u32[72,128]{1,0:T(1,128)}', space=vmem, size = 0x9000, scoped, tag = 'internal scratch']
  %s0 = inlined_call_operand.vmem [shape: f32[512,128], index: 0, kind: input, shape index: {}]
  %s1 = inlined_call_operand.vmem [shape: s32[512,1], index: 1, kind: input, shape index: {}]
  %s2 = inlined_call_operand.vmem [shape: f32[128,128], index: 2, kind: input, shape index: {}]
  %s3 = inlined_call_operand.vmem [shape: s32[1,128], index: 3, kind: input, shape index: {}]
  %s4 = inlined_call_operand.hbm [shape: f32[1,1], index: 4, kind: output, shape index: {}]
  %s5 = sld [smem:[#allocation0]]
  $region30: #{contrast_loss_pallas.1} parent=0
    _
  %s7 = ssub.s32 1, %s5
  %s8 = scalar_select 0, %s7, %s5
  $region1: #{contrast_loss_pallas.1} parent=0
    #allocation2 [shape = 'u8[512]{0}', space=smem, size = 0x200, scoped, tag = 'output window, operand 0, single buffered']
    #allocation3 [shape = 's32[1]{0}', space=sflag, size = 0x4, scoped, tag = 'scoped memory for contrast_loss_pallas.1']
    %9 = vsyncpa [#allocation3], 0
    // Predicated region
    $region2: #{contrast_loss_pallas.1} parent=1 // pred_check
      _
    $region3: #{contrast_loss_pallas.1} parent=1 // pred_check_branch
      %11 = sbr.rel (0) target = $region5
    $region4: #{contrast_loss_pallas.1} parent=1 // pred_region
      _
    $region5: #{contrast_loss_pallas.1} parent=1 // pred_fallthru
      _
    // Predicated region
    $region6: #{contrast_loss_pallas.1} parent=1 // pred_check
      _
    $region7: #{contrast_loss_pallas.1} parent=1 // pred_check_branch
      %13 = sbr.rel (0) target = $region9
    $region8: #{contrast_loss_pallas.1} parent=1 // pred_region
      _
    $region9: #{contrast_loss_pallas.1} parent=1 // pred_fallthru
      _
    // Predicated region
    $region10: #{contrast_loss_pallas.1} parent=1 // pred_check
      _
    $region11: #{contrast_loss_pallas.1} parent=1 // pred_check_branch
      %15 = sbr.rel (0) target = $region13
    $region12: #{contrast_loss_pallas.1} parent=1 // pred_region
      _
    $region13: #{contrast_loss_pallas.1} parent=1 // pred_fallthru
      _
    // Predicated region
    $region14: #{contrast_loss_pallas.1} parent=1 // pred_check
      _
    $region15: #{contrast_loss_pallas.1} parent=1 // pred_check_branch
      %17 = sbr.rel (0) target = $region17
    $region16: #{contrast_loss_pallas.1} parent=1 // pred_region
      _
    $region17: #{contrast_loss_pallas.1} parent=1 // pred_fallthru
      _
    %v18 = vld [vmem:[%s0] sm:$0xff]
    %v19 = vld [vmem:[%s0 + $0x8] sm:$0xff]
    %v20 = vld [vmem:[%s0 + $0x10] sm:$0xff]
    %v21 = vld [vmem:[%s0 + $0x18] sm:$0xff]
    %v22 = vld [vmem:[%s0 + $0x20] sm:$0xff]
    %v23 = vld [vmem:[%s0 + $0x28] sm:$0xff]
    %v24 = vld [vmem:[%s0 + $0x30] sm:$0xff]
    %v25 = vld [vmem:[%s0 + $0x38] sm:$0xff]
    %v26 = vld [vmem:[%s0 + $0x40] sm:$0xff]
    %v27 = vld [vmem:[%s0 + $0x48] sm:$0xff]
    %v28 = vld [vmem:[%s0 + $0x50] sm:$0xff]
    %v29 = vld [vmem:[%s0 + $0x58] sm:$0xff]
    %v30 = vld [vmem:[%s0 + $0x60] sm:$0xff]
    %v31 = vld [vmem:[%s0 + $0x68] sm:$0xff]
    %v32 = vld [vmem:[%s0 + $0x70] sm:$0xff]
    %v33 = vld [vmem:[%s0 + $0x78] sm:$0xff]
    %v34 = vld [vmem:[%s0 + $0x80] sm:$0xff]
    %v35 = vld [vmem:[%s0 + $0x88] sm:$0xff]
    %v36 = vld [vmem:[%s0 + $0x90] sm:$0xff]
    %v37 = vld [vmem:[%s0 + $0x98] sm:$0xff]
    %v38 = vld [vmem:[%s0 + $0xa0] sm:$0xff]
    %v39 = vld [vmem:[%s0 + $0xa8] sm:$0xff]
    %v40 = vld [vmem:[%s0 + $0xb0] sm:$0xff]
    %v41 = vld [vmem:[%s0 + $0xb8] sm:$0xff]
    %v42 = vld [vmem:[%s0 + $0xc0] sm:$0xff]
    %v43 = vld [vmem:[%s0 + $0xc8] sm:$0xff]
    %v44 = vld [vmem:[%s0 + $0xd0] sm:$0xff]
    %v45 = vld [vmem:[%s0 + $0xd8] sm:$0xff]
    %v46 = vld [vmem:[%s0 + $0xe0] sm:$0xff]
    %v47 = vld [vmem:[%s0 + $0xe8] sm:$0xff]
    %v48 = vld [vmem:[%s0 + $0xf0] sm:$0xff]
    %v49 = vld [vmem:[%s0 + $0xf8] sm:$0xff]
    %v50 = vld [vmem:[%s0 + $0x100] sm:$0xff]
    %v51 = vld [vmem:[%s0 + $0x108] sm:$0xff]
    %v52 = vld [vmem:[%s0 + $0x110] sm:$0xff]
    %v53 = vld [vmem:[%s0 + $0x118] sm:$0xff]
    %v54 = vld [vmem:[%s0 + $0x120] sm:$0xff]
    %v55 = vld [vmem:[%s0 + $0x128] sm:$0xff]
    %v56 = vld [vmem:[%s0 + $0x130] sm:$0xff]
    %v57 = vld [vmem:[%s0 + $0x138] sm:$0xff]
    %v58 = vld [vmem:[%s0 + $0x140] sm:$0xff]
    %v59 = vld [vmem:[%s0 + $0x148] sm:$0xff]
    %v60 = vld [vmem:[%s0 + $0x150] sm:$0xff]
    %v61 = vld [vmem:[%s0 + $0x158] sm:$0xff]
    %v62 = vld [vmem:[%s0 + $0x160] sm:$0xff]
    %v63 = vld [vmem:[%s0 + $0x168] sm:$0xff]
    %v64 = vld [vmem:[%s0 + $0x170] sm:$0xff]
    %v65 = vld [vmem:[%s0 + $0x178] sm:$0xff]
    %v66 = vld [vmem:[%s0 + $0x180] sm:$0xff]
    %v67 = vld [vmem:[%s0 + $0x188] sm:$0xff]
    %v68 = vld [vmem:[%s0 + $0x190] sm:$0xff]
    %v69 = vld [vmem:[%s0 + $0x198] sm:$0xff]
    %v70 = vld [vmem:[%s0 + $0x1a0] sm:$0xff]
    %v71 = vld [vmem:[%s0 + $0x1a8] sm:$0xff]
    %v72 = vld [vmem:[%s0 + $0x1b0] sm:$0xff]
    %v73 = vld [vmem:[%s0 + $0x1b8] sm:$0xff]
    %v74 = vld [vmem:[%s0 + $0x1c0] sm:$0xff]
    %v75 = vld [vmem:[%s0 + $0x1c8] sm:$0xff]
    %v76 = vld [vmem:[%s0 + $0x1d0] sm:$0xff]
    %v77 = vld [vmem:[%s0 + $0x1d8] sm:$0xff]
    %v78 = vld [vmem:[%s0 + $0x1e0] sm:$0xff]
    %v79 = vld [vmem:[%s0 + $0x1e8] sm:$0xff]
    %v80 = vld [vmem:[%s0 + $0x1f0] sm:$0xff]
    %v81 = vld [vmem:[%s0 + $0x1f8] sm:$0xff]
    %v82 = vld [vmem:[%s2] sm:$0xff]
    %v83 = vld [vmem:[%s2 + $0x8] sm:$0xff]
    %v84 = vld [vmem:[%s2 + $0x10] sm:$0xff]
    %v85 = vld [vmem:[%s2 + $0x18] sm:$0xff]
    %v86 = vld [vmem:[%s2 + $0x20] sm:$0xff]
    %v87 = vld [vmem:[%s2 + $0x28] sm:$0xff]
    %v88 = vld [vmem:[%s2 + $0x30] sm:$0xff]
    %v89 = vld [vmem:[%s2 + $0x38] sm:$0xff]
    %v90 = vld [vmem:[%s2 + $0x40] sm:$0xff]
    %v91 = vld [vmem:[%s2 + $0x48] sm:$0xff]
    %v92 = vld [vmem:[%s2 + $0x50] sm:$0xff]
    %v93 = vld [vmem:[%s2 + $0x58] sm:$0xff]
    %v94 = vld [vmem:[%s2 + $0x60] sm:$0xff]
    %v95 = vld [vmem:[%s2 + $0x68] sm:$0xff]
    %v96 = vld [vmem:[%s2 + $0x70] sm:$0xff]
    %v97 = vld [vmem:[%s2 + $0x78] sm:$0xff]
    %v98 = vld [vmem:[%s1] sm:$0xff]
    %v99 = vld [vmem:[%s1 + $0x8] sm:$0xff]
    %v100 = vld [vmem:[%s1 + $0x10] sm:$0xff]
    %v101 = vld [vmem:[%s1 + $0x18] sm:$0xff]
    %v102 = vld [vmem:[%s1 + $0x20] sm:$0xff]
    %v103 = vld [vmem:[%s1 + $0x28] sm:$0xff]
    %v104 = vld [vmem:[%s1 + $0x30] sm:$0xff]
    %v105 = vld [vmem:[%s1 + $0x38] sm:$0xff]
    %v106 = vld [vmem:[%s1 + $0x40] sm:$0xff]
    %v107 = vld [vmem:[%s1 + $0x48] sm:$0xff]
    %v108 = vld [vmem:[%s1 + $0x50] sm:$0xff]
    %v109 = vld [vmem:[%s1 + $0x58] sm:$0xff]
    %v110 = vld [vmem:[%s1 + $0x60] sm:$0xff]
    %v111 = vld [vmem:[%s1 + $0x68] sm:$0xff]
    %v112 = vld [vmem:[%s1 + $0x70] sm:$0xff]
    %v113 = vld [vmem:[%s1 + $0x78] sm:$0xff]
    %v114 = vld [vmem:[%s1 + $0x80] sm:$0xff]
    %v115 = vld [vmem:[%s1 + $0x88] sm:$0xff]
    %v116 = vld [vmem:[%s1 + $0x90] sm:$0xff]
    %v117 = vld [vmem:[%s1 + $0x98] sm:$0xff]
    %v118 = vld [vmem:[%s1 + $0xa0] sm:$0xff]
    %v119 = vld [vmem:[%s1 + $0xa8] sm:$0xff]
    %v120 = vld [vmem:[%s1 + $0xb0] sm:$0xff]
    %v121 = vld [vmem:[%s1 + $0xb8] sm:$0xff]
    %v122 = vld [vmem:[%s1 + $0xc0] sm:$0xff]
    %v123 = vld [vmem:[%s1 + $0xc8] sm:$0xff]
    %v124 = vld [vmem:[%s1 + $0xd0] sm:$0xff]
    %v125 = vld [vmem:[%s1 + $0xd8] sm:$0xff]
    %v126 = vld [vmem:[%s1 + $0xe0] sm:$0xff]
    %v127 = vld [vmem:[%s1 + $0xe8] sm:$0xff]
    %v128 = vld [vmem:[%s1 + $0xf0] sm:$0xff]
    %v129 = vld [vmem:[%s1 + $0xf8] sm:$0xff]
    %v130 = vld [vmem:[%s1 + $0x100] sm:$0xff]
    %v131 = vld [vmem:[%s1 + $0x108] sm:$0xff]
    %v132 = vld [vmem:[%s1 + $0x110] sm:$0xff]
    %v133 = vld [vmem:[%s1 + $0x118] sm:$0xff]
    %v134 = vld [vmem:[%s1 + $0x120] sm:$0xff]
    %v135 = vld [vmem:[%s1 + $0x128] sm:$0xff]
    %v136 = vld [vmem:[%s1 + $0x130] sm:$0xff]
    %v137 = vld [vmem:[%s1 + $0x138] sm:$0xff]
    %v138 = vld [vmem:[%s1 + $0x140] sm:$0xff]
    %v139 = vld [vmem:[%s1 + $0x148] sm:$0xff]
    %v140 = vld [vmem:[%s1 + $0x150] sm:$0xff]
    %v141 = vld [vmem:[%s1 + $0x158] sm:$0xff]
    %v142 = vld [vmem:[%s1 + $0x160] sm:$0xff]
    %v143 = vld [vmem:[%s1 + $0x168] sm:$0xff]
    %v144 = vld [vmem:[%s1 + $0x170] sm:$0xff]
    %v145 = vld [vmem:[%s1 + $0x178] sm:$0xff]
    %v146 = vld [vmem:[%s1 + $0x180] sm:$0xff]
    %v147 = vld [vmem:[%s1 + $0x188] sm:$0xff]
    %v148 = vld [vmem:[%s1 + $0x190] sm:$0xff]
    %v149 = vld [vmem:[%s1 + $0x198] sm:$0xff]
    %v150 = vld [vmem:[%s1 + $0x1a0] sm:$0xff]
    %v151 = vld [vmem:[%s1 + $0x1a8] sm:$0xff]
    %v152 = vld [vmem:[%s1 + $0x1b0] sm:$0xff]
    %v153 = vld [vmem:[%s1 + $0x1b8] sm:$0xff]
    %v154 = vld [vmem:[%s1 + $0x1c0] sm:$0xff]
    %v155 = vld [vmem:[%s1 + $0x1c8] sm:$0xff]
    %v156 = vld [vmem:[%s1 + $0x1d0] sm:$0xff]
    %v157 = vld [vmem:[%s1 + $0x1d8] sm:$0xff]
    %v158 = vld [vmem:[%s1 + $0x1e0] sm:$0xff]
    %v159 = vld [vmem:[%s1 + $0x1e8] sm:$0xff]
    %v160 = vld [vmem:[%s1 + $0x1f0] sm:$0xff]
    %v161 = vld [vmem:[%s1 + $0x1f8] sm:$0xff]
    %v162 = vld [vmem:[%s3] sm:$0x1]
    %163 = vmatpush.msra.mxu0 %v97
    %164 = vmatpush.msra.mxu0 %v96
    %165 = vmatpush.msra.mxu0 %v95
    %166 = vmatpush.msra.mxu0 %v94
    %167 = vmatpush.msra.mxu0 %v93
    %168 = vmatpush.msra.mxu0 %v92
    %169 = vmatpush.msra.mxu0 %v91
    %170 = vmatpush.msra.mxu0 %v90
    %171 = vmatpush.msra.mxu0 %v89
    %172 = vmatpush.msra.mxu0 %v88
    %173 = vmatpush.msra.mxu0 %v87
    %174 = vmatpush.msra.mxu0 %v86
    %175 = vmatpush.msra.mxu0 %v85
    %176 = vmatpush.msra.mxu0 %v84
    %177 = vmatpush.msra.mxu0 %v83
    %178 = vmatpush.msra.mxu0 %v82
    %179 = vmatmul.f32.gmra.mxu0 %v18
    %v180 = vpop.f32.mrf.mxu0
    %v181 = vadd.f32 0.0, %v180
    %182 = vmatmul.f32.gmra.mxu0 %v19
    %v183 = vpop.f32.mrf.mxu0
    %v184 = vadd.f32 0.0, %v183
    %185 = vmatmul.f32.gmra.mxu0 %v20
    %v186 = vpop.f32.mrf.mxu0
    %v187 = vadd.f32 0.0, %v186
    %188 = vmatmul.f32.gmra.mxu0 %v21
    %v189 = vpop.f32.mrf.mxu0
    %v190 = vadd.f32 0.0, %v189
    %191 = vmatmul.f32.gmra.mxu0 %v22
    %v192 = vpop.f32.mrf.mxu0
    %v193 = vadd.f32 0.0, %v192
    %194 = vmatmul.f32.gmra.mxu0 %v23
    %v195 = vpop.f32.mrf.mxu0
    %v196 = vadd.f32 0.0, %v195
    %197 = vmatmul.f32.gmra.mxu0 %v24
    %v198 = vpop.f32.mrf.mxu0
    %v199 = vadd.f32 0.0, %v198
    %200 = vmatmul.f32.gmra.mxu0 %v25
    %v201 = vpop.f32.mrf.mxu0
    %v202 = vadd.f32 0.0, %v201
    %203 = vmatmul.f32.gmra.mxu0 %v26
    %v204 = vpop.f32.mrf.mxu0
    %v205 = vadd.f32 0.0, %v204
    %206 = vmatmul.f32.gmra.mxu0 %v27
    %v207 = vpop.f32.mrf.mxu0
    %v208 = vadd.f32 0.0, %v207
    %209 = vmatmul.f32.gmra.mxu0 %v28
    %v210 = vpop.f32.mrf.mxu0
    %v211 = vadd.f32 0.0, %v210
    %212 = vmatmul.f32.gmra.mxu0 %v29
    %v213 = vpop.f32.mrf.mxu0
    %v214 = vadd.f32 0.0, %v213
    %215 = vmatmul.f32.gmra.mxu0 %v30
    %v216 = vpop.f32.mrf.mxu0
    %v217 = vadd.f32 0.0, %v216
    %218 = vmatmul.f32.gmra.mxu0 %v31
    %v219 = vpop.f32.mrf.mxu0
    %v220 = vadd.f32 0.0, %v219
    %221 = vmatmul.f32.gmra.mxu0 %v32
    %v222 = vpop.f32.mrf.mxu0
    %v223 = vadd.f32 0.0, %v222
    %224 = vmatmul.f32.gmra.mxu0 %v33
    %v225 = vpop.f32.mrf.mxu0
    %v226 = vadd.f32 0.0, %v225
    %227 = vmatmul.f32.gmra.mxu0 %v34
    %v228 = vpop.f32.mrf.mxu0
    %v229 = vadd.f32 0.0, %v228
    %230 = vmatmul.f32.gmra.mxu0 %v35
    %v231 = vpop.f32.mrf.mxu0
    %v232 = vadd.f32 0.0, %v231
    %233 = vmatmul.f32.gmra.mxu0 %v36
    %v234 = vpop.f32.mrf.mxu0
    %v235 = vadd.f32 0.0, %v234
    %236 = vmatmul.f32.gmra.mxu0 %v37
    %v237 = vpop.f32.mrf.mxu0
    %v238 = vadd.f32 0.0, %v237
    %239 = vmatmul.f32.gmra.mxu0 %v38
    %v240 = vpop.f32.mrf.mxu0
    %v241 = vadd.f32 0.0, %v240
    %242 = vmatmul.f32.gmra.mxu0 %v39
    %v243 = vpop.f32.mrf.mxu0
    %v244 = vadd.f32 0.0, %v243
    %245 = vmatmul.f32.gmra.mxu0 %v40
    %v246 = vpop.f32.mrf.mxu0
    %v247 = vadd.f32 0.0, %v246
    %248 = vmatmul.f32.gmra.mxu0 %v41
    %v249 = vpop.f32.mrf.mxu0
    %v250 = vadd.f32 0.0, %v249
    %251 = vmatmul.f32.gmra.mxu0 %v42
    %v252 = vpop.f32.mrf.mxu0
    %v253 = vadd.f32 0.0, %v252
    %254 = vmatmul.f32.gmra.mxu0 %v43
    %v255 = vpop.f32.mrf.mxu0
    %v256 = vadd.f32 0.0, %v255
    %257 = vmatmul.f32.gmra.mxu0 %v44
    %v258 = vpop.f32.mrf.mxu0
    %v259 = vadd.f32 0.0, %v258
    %260 = vmatmul.f32.gmra.mxu0 %v45
    %v261 = vpop.f32.mrf.mxu0
    %v262 = vadd.f32 0.0, %v261
    %263 = vmatmul.f32.gmra.mxu0 %v46
    %v264 = vpop.f32.mrf.mxu0
    %v265 = vadd.f32 0.0, %v264
    %266 = vmatmul.f32.gmra.mxu0 %v47
    %v267 = vpop.f32.mrf.mxu0
    %v268 = vadd.f32 0.0, %v267
    %269 = vmatmul.f32.gmra.mxu0 %v48
    %v270 = vpop.f32.mrf.mxu0
    %v271 = vadd.f32 0.0, %v270
    %272 = vmatmul.f32.gmra.mxu0 %v49
    %v273 = vpop.f32.mrf.mxu0
    %v274 = vadd.f32 0.0, %v273
    %275 = vmatmul.f32.gmra.mxu0 %v50
    %v276 = vpop.f32.mrf.mxu0
    %v277 = vadd.f32 0.0, %v276
    %278 = vmatmul.f32.gmra.mxu0 %v51
    %v279 = vpop.f32.mrf.mxu0
    %v280 = vadd.f32 0.0, %v279
    %281 = vmatmul.f32.gmra.mxu0 %v52
    %v282 = vpop.f32.mrf.mxu0
    %v283 = vadd.f32 0.0, %v282
    %284 = vmatmul.f32.gmra.mxu0 %v53
    %v285 = vpop.f32.mrf.mxu0
    %v286 = vadd.f32 0.0, %v285
    %287 = vmatmul.f32.gmra.mxu0 %v54
    %v288 = vpop.f32.mrf.mxu0
    %v289 = vadd.f32 0.0, %v288
    %290 = vmatmul.f32.gmra.mxu0 %v55
    %v291 = vpop.f32.mrf.mxu0
    %v292 = vadd.f32 0.0, %v291
    %293 = vmatmul.f32.gmra.mxu0 %v56
    %v294 = vpop.f32.mrf.mxu0
    %v295 = vadd.f32 0.0, %v294
    %296 = vmatmul.f32.gmra.mxu0 %v57
    %v297 = vpop.f32.mrf.mxu0
    %v298 = vadd.f32 0.0, %v297
    %299 = vmatmul.f32.gmra.mxu0 %v58
    %v300 = vpop.f32.mrf.mxu0
    %v301 = vadd.f32 0.0, %v300
    %302 = vmatmul.f32.gmra.mxu0 %v59
    %v303 = vpop.f32.mrf.mxu0
    %v304 = vadd.f32 0.0, %v303
    %305 = vmatmul.f32.gmra.mxu0 %v60
    %v306 = vpop.f32.mrf.mxu0
    %v307 = vadd.f32 0.0, %v306
    %308 = vmatmul.f32.gmra.mxu0 %v61
    %v309 = vpop.f32.mrf.mxu0
    %v310 = vadd.f32 0.0, %v309
    %311 = vmatmul.f32.gmra.mxu0 %v62
    %v312 = vpop.f32.mrf.mxu0
    %v313 = vadd.f32 0.0, %v312
    %314 = vmatmul.f32.gmra.mxu0 %v63
    %v315 = vpop.f32.mrf.mxu0
    %v316 = vadd.f32 0.0, %v315
    %317 = vmatmul.f32.gmra.mxu0 %v64
    %v318 = vpop.f32.mrf.mxu0
    %v319 = vadd.f32 0.0, %v318
    %320 = vmatmul.f32.gmra.mxu0 %v65
    %v321 = vpop.f32.mrf.mxu0
    %v322 = vadd.f32 0.0, %v321
    %323 = vmatmul.f32.gmra.mxu0 %v66
    %v324 = vpop.f32.mrf.mxu0
    %v325 = vadd.f32 0.0, %v324
    %326 = vmatmul.f32.gmra.mxu0 %v67
    %v327 = vpop.f32.mrf.mxu0
    %v328 = vadd.f32 0.0, %v327
    %329 = vmatmul.f32.gmra.mxu0 %v68
    %v330 = vpop.f32.mrf.mxu0
    %v331 = vadd.f32 0.0, %v330
    %332 = vmatmul.f32.gmra.mxu0 %v69
    %v333 = vpop.f32.mrf.mxu0
    %v334 = vadd.f32 0.0, %v333
    %335 = vmatmul.f32.gmra.mxu0 %v70
    %v336 = vpop.f32.mrf.mxu0
    %v337 = vadd.f32 0.0, %v336
    %338 = vmatmul.f32.gmra.mxu0 %v71
    %v339 = vpop.f32.mrf.mxu0
    %v340 = vadd.f32 0.0, %v339
    %341 = vmatmul.f32.gmra.mxu0 %v72
    %v342 = vpop.f32.mrf.mxu0
    %v343 = vadd.f32 0.0, %v342
    %344 = vmatmul.f32.gmra.mxu0 %v73
    %v345 = vpop.f32.mrf.mxu0
    %v346 = vadd.f32 0.0, %v345
    %347 = vmatmul.f32.gmra.mxu0 %v74
    %v348 = vpop.f32.mrf.mxu0
    %v349 = vadd.f32 0.0, %v348
    %350 = vmatmul.f32.gmra.mxu0 %v75
    %v351 = vpop.f32.mrf.mxu0
    %v352 = vadd.f32 0.0, %v351
    %353 = vmatmul.f32.gmra.mxu0 %v76
    %v354 = vpop.f32.mrf.mxu0
    %v355 = vadd.f32 0.0, %v354
    %356 = vmatmul.f32.gmra.mxu0 %v77
    %v357 = vpop.f32.mrf.mxu0
    %v358 = vadd.f32 0.0, %v357
    %359 = vmatmul.f32.gmra.mxu0 %v78
    %v360 = vpop.f32.mrf.mxu0
    %v361 = vadd.f32 0.0, %v360
    %362 = vmatmul.f32.gmra.mxu0 %v79
    %v363 = vpop.f32.mrf.mxu0
    %v364 = vadd.f32 0.0, %v363
    %365 = vmatmul.f32.gmra.mxu0 %v80
    %v366 = vpop.f32.mrf.mxu0
    %v367 = vadd.f32 0.0, %v366
    %368 = vmatmul.f32.gmra.mxu0 %v81
    %v369 = vpop.f32.mrf.mxu0
    %v370 = vadd.f32 0.0, %v369
    %371 = vdwg.mxu0
    %v372 = vmul.f32 %v181, 14.285714
    %v373 = vmul.f32 %v184, 14.285714
    %v374 = vmul.f32 %v187, 14.285714
    %v375 = vmul.f32 %v190, 14.285714
    %v376 = vmul.f32 %v193, 14.285714
    %v377 = vmul.f32 %v196, 14.285714
    %v378 = vmul.f32 %v199, 14.285714
    %v379 = vmul.f32 %v202, 14.285714
    %v380 = vmul.f32 %v205, 14.285714
    %v381 = vmul.f32 %v208, 14.285714
    %v382 = vmul.f32 %v211, 14.285714
    %v383 = vmul.f32 %v214, 14.285714
    %v384 = vmul.f32 %v217, 14.285714
    %v385 = vmul.f32 %v220, 14.285714
    %v386 = vmul.f32 %v223, 14.285714
    %v387 = vmul.f32 %v226, 14.285714
    %v388 = vmul.f32 %v229, 14.285714
    %v389 = vmul.f32 %v232, 14.285714
    %v390 = vmul.f32 %v235, 14.285714
    %v391 = vmul.f32 %v238, 14.285714
    %v392 = vmul.f32 %v241, 14.285714
    %v393 = vmul.f32 %v244, 14.285714
    %v394 = vmul.f32 %v247, 14.285714
    %v395 = vmul.f32 %v250, 14.285714
    %v396 = vmul.f32 %v253, 14.285714
    %v397 = vmul.f32 %v256, 14.285714
    %v398 = vmul.f32 %v259, 14.285714
    %v399 = vmul.f32 %v262, 14.285714
    %v400 = vmul.f32 %v265, 14.285714
    %v401 = vmul.f32 %v268, 14.285714
    %v402 = vmul.f32 %v271, 14.285714
    %v403 = vmul.f32 %v274, 14.285714
    %v404 = vmul.f32 %v277, 14.285714
    %v405 = vmul.f32 %v280, 14.285714
    %v406 = vmul.f32 %v283, 14.285714
    %v407 = vmul.f32 %v286, 14.285714
    %v408 = vmul.f32 %v289, 14.285714
    %v409 = vmul.f32 %v292, 14.285714
    %v410 = vmul.f32 %v295, 14.285714
    %v411 = vmul.f32 %v298, 14.285714
    %v412 = vmul.f32 %v301, 14.285714
    %v413 = vmul.f32 %v304, 14.285714
    %v414 = vmul.f32 %v307, 14.285714
    %v415 = vmul.f32 %v310, 14.285714
    %v416 = vmul.f32 %v313, 14.285714
    %v417 = vmul.f32 %v316, 14.285714
    %v418 = vmul.f32 %v319, 14.285714
    %v419 = vmul.f32 %v322, 14.285714
    %v420 = vmul.f32 %v325, 14.285714
    %v421 = vmul.f32 %v328, 14.285714
    %v422 = vmul.f32 %v331, 14.285714
    %v423 = vmul.f32 %v334, 14.285714
    %v424 = vmul.f32 %v337, 14.285714
    %v425 = vmul.f32 %v340, 14.285714
    %v426 = vmul.f32 %v343, 14.285714
    %v427 = vmul.f32 %v346, 14.285714
    %v428 = vmul.f32 %v349, 14.285714
    %v429 = vmul.f32 %v352, 14.285714
    %v430 = vmul.f32 %v355, 14.285714
    %v431 = vmul.f32 %v358, 14.285714
    %v432 = vmul.f32 %v361, 14.285714
    %v433 = vmul.f32 %v364, 14.285714
    %v434 = vmul.f32 %v367, 14.285714
    %v435 = vmul.f32 %v370, 14.285714
    %vm436 = vcmp.ge.s32.totalorder %v162, 0
    %437 = vset.pattern.permute.xlu0 0
    %438 = vperm.xlu0 %437, %v98
    %v439 = vpop.permute.xlu0 %438
    %440 = vset.pattern.permute.xlu0 0
    %441 = vperm.xlu0 %440, %v99
    %v442 = vpop.permute.xlu0 %441
    %443 = vset.pattern.permute.xlu0 0
    %444 = vperm.xlu0 %443, %v100
    %v445 = vpop.permute.xlu0 %444
    %446 = vset.pattern.permute.xlu0 0
    %447 = vperm.xlu0 %446, %v101
    %v448 = vpop.permute.xlu0 %447
    %449 = vset.pattern.permute.xlu0 0
    %450 = vperm.xlu0 %449, %v102
    %v451 = vpop.permute.xlu0 %450
    %452 = vset.pattern.permute.xlu0 0
    %453 = vperm.xlu0 %452, %v103
    %v454 = vpop.permute.xlu0 %453
    %455 = vset.pattern.permute.xlu0 0
    %456 = vperm.xlu0 %455, %v104
    %v457 = vpop.permute.xlu0 %456
    %458 = vset.pattern.permute.xlu0 0
    %459 = vperm.xlu0 %458, %v105
    %v460 = vpop.permute.xlu0 %459
    %461 = vset.pattern.permute.xlu0 0
    %462 = vperm.xlu0 %461, %v106
    %v463 = vpop.permute.xlu0 %462
    %464 = vset.pattern.permute.xlu0 0
    %465 = vperm.xlu0 %464, %v107
    %v466 = vpop.permute.xlu0 %465
    %467 = vset.pattern.permute.xlu0 0
    %468 = vperm.xlu0 %467, %v108
    %v469 = vpop.permute.xlu0 %468
    %470 = vset.pattern.permute.xlu0 0
    %471 = vperm.xlu0 %470, %v109
    %v472 = vpop.permute.xlu0 %471
    %473 = vset.pattern.permute.xlu0 0
    %474 = vperm.xlu0 %473, %v110
    %v475 = vpop.permute.xlu0 %474
    %476 = vset.pattern.permute.xlu0 0
    %477 = vperm.xlu0 %476, %v111
    %v478 = vpop.permute.xlu0 %477
    %479 = vset.pattern.permute.xlu0 0
    %480 = vperm.xlu0 %479, %v112
    %v481 = vpop.permute.xlu0 %480
    %482 = vset.pattern.permute.xlu0 0
    %483 = vperm.xlu0 %482, %v113
    %v484 = vpop.permute.xlu0 %483
    %485 = vset.pattern.permute.xlu0 0
    %486 = vperm.xlu0 %485, %v114
    %v487 = vpop.permute.xlu0 %486
    %488 = vset.pattern.permute.xlu0 0
    %489 = vperm.xlu0 %488, %v115
    %v490 = vpop.permute.xlu0 %489
    %491 = vset.pattern.permute.xlu0 0
    %492 = vperm.xlu0 %491, %v116
    %v493 = vpop.permute.xlu0 %492
    %494 = vset.pattern.permute.xlu0 0
    %495 = vperm.xlu0 %494, %v117
    %v496 = vpop.permute.xlu0 %495
    %497 = vset.pattern.permute.xlu0 0
    %498 = vperm.xlu0 %497, %v118
    %v499 = vpop.permute.xlu0 %498
    %500 = vset.pattern.permute.xlu0 0
    %501 = vperm.xlu0 %500, %v119
    %v502 = vpop.permute.xlu0 %501
    %503 = vset.pattern.permute.xlu0 0
    %504 = vperm.xlu0 %503, %v120
    %v505 = vpop.permute.xlu0 %504
    %506 = vset.pattern.permute.xlu0 0
    %507 = vperm.xlu0 %506, %v121
    %v508 = vpop.permute.xlu0 %507
    %509 = vset.pattern.permute.xlu0 0
    %510 = vperm.xlu0 %509, %v122
    %v511 = vpop.permute.xlu0 %510
    %512 = vset.pattern.permute.xlu0 0
    %513 = vperm.xlu0 %512, %v123
    %v514 = vpop.permute.xlu0 %513
    %515 = vset.pattern.permute.xlu0 0
    %516 = vperm.xlu0 %515, %v124
    %v517 = vpop.permute.xlu0 %516
    %518 = vset.pattern.permute.xlu0 0
    %519 = vperm.xlu0 %518, %v125
    %v520 = vpop.permute.xlu0 %519
    %521 = vset.pattern.permute.xlu0 0
    %522 = vperm.xlu0 %521, %v126
    %v523 = vpop.permute.xlu0 %522
    %524 = vset.pattern.permute.xlu0 0
    %525 = vperm.xlu0 %524, %v127
    %v526 = vpop.permute.xlu0 %525
    %527 = vset.pattern.permute.xlu0 0
    %528 = vperm.xlu0 %527, %v128
    %v529 = vpop.permute.xlu0 %528
    %530 = vset.pattern.permute.xlu0 0
    %531 = vperm.xlu0 %530, %v129
    %v532 = vpop.permute.xlu0 %531
    %533 = vset.pattern.permute.xlu0 0
    %534 = vperm.xlu0 %533, %v130
    %v535 = vpop.permute.xlu0 %534
    %536 = vset.pattern.permute.xlu0 0
    %537 = vperm.xlu0 %536, %v131
    %v538 = vpop.permute.xlu0 %537
    %539 = vset.pattern.permute.xlu0 0
    %540 = vperm.xlu0 %539, %v132
    %v541 = vpop.permute.xlu0 %540
    %542 = vset.pattern.permute.xlu0 0
    %543 = vperm.xlu0 %542, %v133
    %v544 = vpop.permute.xlu0 %543
    %545 = vset.pattern.permute.xlu0 0
    %546 = vperm.xlu0 %545, %v134
    %v547 = vpop.permute.xlu0 %546
    %548 = vset.pattern.permute.xlu0 0
    %549 = vperm.xlu0 %548, %v135
    %v550 = vpop.permute.xlu0 %549
    %551 = vset.pattern.permute.xlu0 0
    %552 = vperm.xlu0 %551, %v136
    %v553 = vpop.permute.xlu0 %552
    %554 = vset.pattern.permute.xlu0 0
    %555 = vperm.xlu0 %554, %v137
    %v556 = vpop.permute.xlu0 %555
    %557 = vset.pattern.permute.xlu0 0
    %558 = vperm.xlu0 %557, %v138
    %v559 = vpop.permute.xlu0 %558
    %560 = vset.pattern.permute.xlu0 0
    %561 = vperm.xlu0 %560, %v139
    %v562 = vpop.permute.xlu0 %561
    %563 = vset.pattern.permute.xlu0 0
    %564 = vperm.xlu0 %563, %v140
    %v565 = vpop.permute.xlu0 %564
    %566 = vset.pattern.permute.xlu0 0
    %567 = vperm.xlu0 %566, %v141
    %v568 = vpop.permute.xlu0 %567
    %569 = vset.pattern.permute.xlu0 0
    %570 = vperm.xlu0 %569, %v142
    %v571 = vpop.permute.xlu0 %570
    %572 = vset.pattern.permute.xlu0 0
    %573 = vperm.xlu0 %572, %v143
    %v574 = vpop.permute.xlu0 %573
    %575 = vset.pattern.permute.xlu0 0
    %576 = vperm.xlu0 %575, %v144
    %v577 = vpop.permute.xlu0 %576
    %578 = vset.pattern.permute.xlu0 0
    %579 = vperm.xlu0 %578, %v145
    %v580 = vpop.permute.xlu0 %579
    %581 = vset.pattern.permute.xlu0 0
    %582 = vperm.xlu0 %581, %v146
    %v583 = vpop.permute.xlu0 %582
    %584 = vset.pattern.permute.xlu0 0
    %585 = vperm.xlu0 %584, %v147
    %v586 = vpop.permute.xlu0 %585
    %587 = vset.pattern.permute.xlu0 0
    %588 = vperm.xlu0 %587, %v148
    %v589 = vpop.permute.xlu0 %588
    %590 = vset.pattern.permute.xlu0 0
    %591 = vperm.xlu0 %590, %v149
    %v592 = vpop.permute.xlu0 %591
    %593 = vset.pattern.permute.xlu0 0
    %594 = vperm.xlu0 %593, %v150
    %v595 = vpop.permute.xlu0 %594
    %596 = vset.pattern.permute.xlu0 0
    %597 = vperm.xlu0 %596, %v151
    %v598 = vpop.permute.xlu0 %597
    %599 = vset.pattern.permute.xlu0 0
    %600 = vperm.xlu0 %599, %v152
    %v601 = vpop.permute.xlu0 %600
    %602 = vset.pattern.permute.xlu0 0
    %603 = vperm.xlu0 %602, %v153
    %v604 = vpop.permute.xlu0 %603
    %605 = vset.pattern.permute.xlu0 0
    %606 = vperm.xlu0 %605, %v154
    %v607 = vpop.permute.xlu0 %606
    %608 = vset.pattern.permute.xlu0 0
    %609 = vperm.xlu0 %608, %v155
    %v610 = vpop.permute.xlu0 %609
    %611 = vset.pattern.permute.xlu0 0
    %612 = vperm.xlu0 %611, %v156
    %v613 = vpop.permute.xlu0 %612
    %614 = vset.pattern.permute.xlu0 0
    %615 = vperm.xlu0 %614, %v157
    %v616 = vpop.permute.xlu0 %615
    %617 = vset.pattern.permute.xlu0 0
    %618 = vperm.xlu0 %617, %v158
    %v619 = vpop.permute.xlu0 %618
    %620 = vset.pattern.permute.xlu0 0
    %621 = vperm.xlu0 %620, %v159
    %v622 = vpop.permute.xlu0 %621
    %623 = vset.pattern.permute.xlu0 0
    %624 = vperm.xlu0 %623, %v160
    %v625 = vpop.permute.xlu0 %624
    %626 = vset.pattern.permute.xlu0 0
    %627 = vperm.xlu0 %626, %v161
    %v628 = vpop.permute.xlu0 %627
    %v629 = vperm.slane %v162, 0
    %vm630 = vcmp.eq.s32.totalorder %v439, %v629
    %vm631 = vcmp.eq.s32.totalorder %v442, %v629
    %vm632 = vcmp.eq.s32.totalorder %v445, %v629
    %vm633 = vcmp.eq.s32.totalorder %v448, %v629
    %vm634 = vcmp.eq.s32.totalorder %v451, %v629
    %vm635 = vcmp.eq.s32.totalorder %v454, %v629
    %vm636 = vcmp.eq.s32.totalorder %v457, %v629
    %vm637 = vcmp.eq.s32.totalorder %v460, %v629
    %vm638 = vcmp.eq.s32.totalorder %v463, %v629
    %vm639 = vcmp.eq.s32.totalorder %v466, %v629
    %vm640 = vcmp.eq.s32.totalorder %v469, %v629
    %vm641 = vcmp.eq.s32.totalorder %v472, %v629
    %vm642 = vcmp.eq.s32.totalorder %v475, %v629
    %vm643 = vcmp.eq.s32.totalorder %v478, %v629
    %vm644 = vcmp.eq.s32.totalorder %v481, %v629
    %vm645 = vcmp.eq.s32.totalorder %v484, %v629
    %vm646 = vcmp.eq.s32.totalorder %v487, %v629
    %vm647 = vcmp.eq.s32.totalorder %v490, %v629
    %vm648 = vcmp.eq.s32.totalorder %v493, %v629
    %vm649 = vcmp.eq.s32.totalorder %v496, %v629
    %vm650 = vcmp.eq.s32.totalorder %v499, %v629
    %vm651 = vcmp.eq.s32.totalorder %v502, %v629
    %vm652 = vcmp.eq.s32.totalorder %v505, %v629
    %vm653 = vcmp.eq.s32.totalorder %v508, %v629
    %vm654 = vcmp.eq.s32.totalorder %v511, %v629
    %vm655 = vcmp.eq.s32.totalorder %v514, %v629
    %vm656 = vcmp.eq.s32.totalorder %v517, %v629
    %vm657 = vcmp.eq.s32.totalorder %v520, %v629
    %vm658 = vcmp.eq.s32.totalorder %v523, %v629
    %vm659 = vcmp.eq.s32.totalorder %v526, %v629
    %vm660 = vcmp.eq.s32.totalorder %v529, %v629
    %vm661 = vcmp.eq.s32.totalorder %v532, %v629
    %vm662 = vcmp.eq.s32.totalorder %v535, %v629
    %vm663 = vcmp.eq.s32.totalorder %v538, %v629
    %vm664 = vcmp.eq.s32.totalorder %v541, %v629
    %vm665 = vcmp.eq.s32.totalorder %v544, %v629
    %vm666 = vcmp.eq.s32.totalorder %v547, %v629
    %vm667 = vcmp.eq.s32.totalorder %v550, %v629
    %vm668 = vcmp.eq.s32.totalorder %v553, %v629
    %vm669 = vcmp.eq.s32.totalorder %v556, %v629
    %vm670 = vcmp.eq.s32.totalorder %v559, %v629
    %vm671 = vcmp.eq.s32.totalorder %v562, %v629
    %vm672 = vcmp.eq.s32.totalorder %v565, %v629
    %vm673 = vcmp.eq.s32.totalorder %v568, %v629
    %vm674 = vcmp.eq.s32.totalorder %v571, %v629
    %vm675 = vcmp.eq.s32.totalorder %v574, %v629
    %vm676 = vcmp.eq.s32.totalorder %v577, %v629
    %vm677 = vcmp.eq.s32.totalorder %v580, %v629
    %vm678 = vcmp.eq.s32.totalorder %v583, %v629
    %vm679 = vcmp.eq.s32.totalorder %v586, %v629
    %vm680 = vcmp.eq.s32.totalorder %v589, %v629
    %vm681 = vcmp.eq.s32.totalorder %v592, %v629
    %vm682 = vcmp.eq.s32.totalorder %v595, %v629
    %vm683 = vcmp.eq.s32.totalorder %v598, %v629
    %vm684 = vcmp.eq.s32.totalorder %v601, %v629
    %vm685 = vcmp.eq.s32.totalorder %v604, %v629
    %vm686 = vcmp.eq.s32.totalorder %v607, %v629
    %vm687 = vcmp.eq.s32.totalorder %v610, %v629
    %vm688 = vcmp.eq.s32.totalorder %v613, %v629
    %vm689 = vcmp.eq.s32.totalorder %v616, %v629
    %vm690 = vcmp.eq.s32.totalorder %v619, %v629
    %vm691 = vcmp.eq.s32.totalorder %v622, %v629
    %vm692 = vcmp.eq.s32.totalorder %v625, %v629
    %vm693 = vcmp.eq.s32.totalorder %v628, %v629
    %v694 = vsel %vm436, 1, 0
    %v695 = vperm.slane %v694, 0
    %vm696 = vcmp.eq.s32.totalorder %v695, 1
    %vm697 = vmand %vm630, %vm696
    %vm698 = vmand %vm631, %vm696
    %vm699 = vmand %vm632, %vm696
    %vm700 = vmand %vm633, %vm696
    %vm701 = vmand %vm634, %vm696
    %vm702 = vmand %vm635, %vm696
    %vm703 = vmand %vm636, %vm696
    %vm704 = vmand %vm637, %vm696
    %vm705 = vmand %vm638, %vm696
    %vm706 = vmand %vm639, %vm696
    %vm707 = vmand %vm640, %vm696
    %vm708 = vmand %vm641, %vm696
    %vm709 = vmand %vm642, %vm696
    %vm710 = vmand %vm643, %vm696
    %vm711 = vmand %vm644, %vm696
    %vm712 = vmand %vm645, %vm696
    %vm713 = vmand %vm646, %vm696
    %vm714 = vmand %vm647, %vm696
    %vm715 = vmand %vm648, %vm696
    %vm716 = vmand %vm649, %vm696
    %vm717 = vmand %vm650, %vm696
    %vm718 = vmand %vm651, %vm696
    %vm719 = vmand %vm652, %vm696
    %vm720 = vmand %vm653, %vm696
    %vm721 = vmand %vm654, %vm696
    %vm722 = vmand %vm655, %vm696
    %vm723 = vmand %vm656, %vm696
    %vm724 = vmand %vm657, %vm696
    %vm725 = vmand %vm658, %vm696
    %vm726 = vmand %vm659, %vm696
    %vm727 = vmand %vm660, %vm696
    %vm728 = vmand %vm661, %vm696
    %vm729 = vmand %vm662, %vm696
    %vm730 = vmand %vm663, %vm696
    %vm731 = vmand %vm664, %vm696
    %vm732 = vmand %vm665, %vm696
    %vm733 = vmand %vm666, %vm696
    %vm734 = vmand %vm667, %vm696
    %vm735 = vmand %vm668, %vm696
    %vm736 = vmand %vm669, %vm696
    %vm737 = vmand %vm670, %vm696
    %vm738 = vmand %vm671, %vm696
    %vm739 = vmand %vm672, %vm696
    %vm740 = vmand %vm673, %vm696
    %vm741 = vmand %vm674, %vm696
    %vm742 = vmand %vm675, %vm696
    %vm743 = vmand %vm676, %vm696
    %vm744 = vmand %vm677, %vm696
    %vm745 = vmand %vm678, %vm696
    %vm746 = vmand %vm679, %vm696
    %vm747 = vmand %vm680, %vm696
    %vm748 = vmand %vm681, %vm696
    %vm749 = vmand %vm682, %vm696
    %vm750 = vmand %vm683, %vm696
    %vm751 = vmand %vm684, %vm696
    %vm752 = vmand %vm685, %vm696
    %vm753 = vmand %vm686, %vm696
    %vm754 = vmand %vm687, %vm696
    %vm755 = vmand %vm688, %vm696
    %vm756 = vmand %vm689, %vm696
    %vm757 = vmand %vm690, %vm696
    %vm758 = vmand %vm691, %vm696
    %vm759 = vmand %vm692, %vm696
    %vm760 = vmand %vm693, %vm696
    %v761 = vsel %vm697, 1, 0
    %v762 = vsel %vm698, 1, 0
    %v763 = vsel %vm699, 1, 0
    %v764 = vsel %vm700, 1, 0
    %v765 = vsel %vm701, 1, 0
    %v766 = vsel %vm702, 1, 0
    %v767 = vsel %vm703, 1, 0
    %v768 = vsel %vm704, 1, 0
    %v769 = vsel %vm705, 1, 0
    %v770 = vsel %vm706, 1, 0
    %v771 = vsel %vm707, 1, 0
    %v772 = vsel %vm708, 1, 0
    %v773 = vsel %vm709, 1, 0
    %v774 = vsel %vm710, 1, 0
    %v775 = vsel %vm711, 1, 0
    %v776 = vsel %vm712, 1, 0
    %v777 = vsel %vm713, 1, 0
    %v778 = vsel %vm714, 1, 0
    %v779 = vsel %vm715, 1, 0
    %v780 = vsel %vm716, 1, 0
    %v781 = vsel %vm717, 1, 0
    %v782 = vsel %vm718, 1, 0
    %v783 = vsel %vm719, 1, 0
    %v784 = vsel %vm720, 1, 0
    %v785 = vsel %vm721, 1, 0
    %v786 = vsel %vm722, 1, 0
    %v787 = vsel %vm723, 1, 0
    %v788 = vsel %vm724, 1, 0
    %v789 = vsel %vm725, 1, 0
    %v790 = vsel %vm726, 1, 0
    %v791 = vsel %vm727, 1, 0
    %v792 = vsel %vm728, 1, 0
    %v793 = vsel %vm729, 1, 0
    %v794 = vsel %vm730, 1, 0
    %v795 = vsel %vm731, 1, 0
    %v796 = vsel %vm732, 1, 0
    %v797 = vsel %vm733, 1, 0
    %v798 = vsel %vm734, 1, 0
    %v799 = vsel %vm735, 1, 0
    %v800 = vsel %vm736, 1, 0
    %v801 = vsel %vm737, 1, 0
    %v802 = vsel %vm738, 1, 0
    %v803 = vsel %vm739, 1, 0
    %v804 = vsel %vm740, 1, 0
    %v805 = vsel %vm741, 1, 0
    %v806 = vsel %vm742, 1, 0
    %v807 = vsel %vm743, 1, 0
    %v808 = vsel %vm744, 1, 0
    %v809 = vsel %vm745, 1, 0
    %v810 = vsel %vm746, 1, 0
    %v811 = vsel %vm747, 1, 0
    %v812 = vsel %vm748, 1, 0
    %v813 = vsel %vm749, 1, 0
    %v814 = vsel %vm750, 1, 0
    %v815 = vsel %vm751, 1, 0
    %v816 = vsel %vm752, 1, 0
    %v817 = vsel %vm753, 1, 0
    %v818 = vsel %vm754, 1, 0
    %v819 = vsel %vm755, 1, 0
    %v820 = vsel %vm756, 1, 0
    %v821 = vsel %vm757, 1, 0
    %v822 = vsel %vm758, 1, 0
    %v823 = vsel %vm759, 1, 0
    %v824 = vsel %vm760, 1, 0
    %v825 = vcvt.s32.f32 %v761
    %v826 = vcvt.s32.f32 %v762
    %v827 = vcvt.s32.f32 %v763
    %v828 = vcvt.s32.f32 %v764
    %v829 = vcvt.s32.f32 %v765
    %v830 = vcvt.s32.f32 %v766
    %v831 = vcvt.s32.f32 %v767
    %v832 = vcvt.s32.f32 %v768
    %v833 = vcvt.s32.f32 %v769
    %v834 = vcvt.s32.f32 %v770
    %v835 = vcvt.s32.f32 %v771
    %v836 = vcvt.s32.f32 %v772
    %v837 = vcvt.s32.f32 %v773
    %v838 = vcvt.s32.f32 %v774
    %v839 = vcvt.s32.f32 %v775
    %v840 = vcvt.s32.f32 %v776
    %v841 = vcvt.s32.f32 %v777
    %v842 = vcvt.s32.f32 %v778
    %v843 = vcvt.s32.f32 %v779
    %v844 = vcvt.s32.f32 %v780
    %v845 = vcvt.s32.f32 %v781
    %v846 = vcvt.s32.f32 %v782
    %v847 = vcvt.s32.f32 %v783
    %v848 = vcvt.s32.f32 %v784
    %v849 = vcvt.s32.f32 %v785
    %v850 = vcvt.s32.f32 %v786
    %v851 = vcvt.s32.f32 %v787
    %v852 = vcvt.s32.f32 %v788
    %v853 = vcvt.s32.f32 %v789
    %v854 = vcvt.s32.f32 %v790
    %v855 = vcvt.s32.f32 %v791
    %v856 = vcvt.s32.f32 %v792
    %v857 = vcvt.s32.f32 %v793
    %v858 = vcvt.s32.f32 %v794
    %v859 = vcvt.s32.f32 %v795
    %v860 = vcvt.s32.f32 %v796
    %v861 = vcvt.s32.f32 %v797
    %v862 = vcvt.s32.f32 %v798
    %v863 = vcvt.s32.f32 %v799
    %v864 = vcvt.s32.f32 %v800
    %v865 = vcvt.s32.f32 %v801
    %v866 = vcvt.s32.f32 %v802
    %v867 = vcvt.s32.f32 %v803
    %v868 = vcvt.s32.f32 %v804
    %v869 = vcvt.s32.f32 %v805
    %v870 = vcvt.s32.f32 %v806
    %v871 = vcvt.s32.f32 %v807
    %v872 = vcvt.s32.f32 %v808
    %v873 = vcvt.s32.f32 %v809
    %v874 = vcvt.s32.f32 %v810
    %v875 = vcvt.s32.f32 %v811
    %v876 = vcvt.s32.f32 %v812
    %v877 = vcvt.s32.f32 %v813
    %v878 = vcvt.s32.f32 %v814
    %v879 = vcvt.s32.f32 %v815
    %v880 = vcvt.s32.f32 %v816
    %v881 = vcvt.s32.f32 %v817
    %v882 = vcvt.s32.f32 %v818
    %v883 = vcvt.s32.f32 %v819
    %v884 = vcvt.s32.f32 %v820
    %v885 = vcvt.s32.f32 %v821
    %v886 = vcvt.s32.f32 %v822
    %v887 = vcvt.s32.f32 %v823
    %v888 = vcvt.s32.f32 %v824
    %v889 = vsel %vm696, %v372, -1e+30
    %v890 = vsel %vm696, %v373, -1e+30
    %v891 = vsel %vm696, %v374, -1e+30
    %v892 = vsel %vm696, %v375, -1e+30
    %v893 = vsel %vm696, %v376, -1e+30
    %v894 = vsel %vm696, %v377, -1e+30
    %v895 = vsel %vm696, %v378, -1e+30
    %v896 = vsel %vm696, %v379, -1e+30
    %v897 = vsel %vm696, %v380, -1e+30
    %v898 = vsel %vm696, %v381, -1e+30
    %v899 = vsel %vm696, %v382, -1e+30
    %v900 = vsel %vm696, %v383, -1e+30
    %v901 = vsel %vm696, %v384, -1e+30
    %v902 = vsel %vm696, %v385, -1e+30
    %v903 = vsel %vm696, %v386, -1e+30
    %v904 = vsel %vm696, %v387, -1e+30
    %v905 = vsel %vm696, %v388, -1e+30
    %v906 = vsel %vm696, %v389, -1e+30
    %v907 = vsel %vm696, %v390, -1e+30
    %v908 = vsel %vm696, %v391, -1e+30
    %v909 = vsel %vm696, %v392, -1e+30
    %v910 = vsel %vm696, %v393, -1e+30
    %v911 = vsel %vm696, %v394, -1e+30
    %v912 = vsel %vm696, %v395, -1e+30
    %v913 = vsel %vm696, %v396, -1e+30
    %v914 = vsel %vm696, %v397, -1e+30
    %v915 = vsel %vm696, %v398, -1e+30
    %v916 = vsel %vm696, %v399, -1e+30
    %v917 = vsel %vm696, %v400, -1e+30
    %v918 = vsel %vm696, %v401, -1e+30
    %v919 = vsel %vm696, %v402, -1e+30
    %v920 = vsel %vm696, %v403, -1e+30
    %v921 = vsel %vm696, %v404, -1e+30
    %v922 = vsel %vm696, %v405, -1e+30
    %v923 = vsel %vm696, %v406, -1e+30
    %v924 = vsel %vm696, %v407, -1e+30
    %v925 = vsel %vm696, %v408, -1e+30
    %v926 = vsel %vm696, %v409, -1e+30
    %v927 = vsel %vm696, %v410, -1e+30
    %v928 = vsel %vm696, %v411, -1e+30
    %v929 = vsel %vm696, %v412, -1e+30
    %v930 = vsel %vm696, %v413, -1e+30
    %v931 = vsel %vm696, %v414, -1e+30
    %v932 = vsel %vm696, %v415, -1e+30
    %v933 = vsel %vm696, %v416, -1e+30
    %v934 = vsel %vm696, %v417, -1e+30
    %v935 = vsel %vm696, %v418, -1e+30
    %v936 = vsel %vm696, %v419, -1e+30
    %v937 = vsel %vm696, %v420, -1e+30
    %v938 = vsel %vm696, %v421, -1e+30
    %v939 = vsel %vm696, %v422, -1e+30
    %v940 = vsel %vm696, %v423, -1e+30
    %v941 = vsel %vm696, %v424, -1e+30
    %v942 = vsel %vm696, %v425, -1e+30
    %v943 = vsel %vm696, %v426, -1e+30
    %v944 = vsel %vm696, %v427, -1e+30
    %v945 = vsel %vm696, %v428, -1e+30
    %v946 = vsel %vm696, %v429, -1e+30
    %v947 = vsel %vm696, %v430, -1e+30
    %v948 = vsel %vm696, %v431, -1e+30
    %v949 = vsel %vm696, %v432, -1e+30
    %v950 = vsel %vm696, %v433, -1e+30
    %v951 = vsel %vm696, %v434, -1e+30
    %v952 = vsel %vm696, %v435, -1e+30
    %953 = vmax.xlane.f32.xlu0 %v889
    %v954 = vpop.xlane.xlu0 %953
    %955 = vmax.xlane.f32.xlu0 %v890
    %v956 = vpop.xlane.xlu0 %955
    %957 = vmax.xlane.f32.xlu0 %v891
    %v958 = vpop.xlane.xlu0 %957
    %959 = vmax.xlane.f32.xlu0 %v892
    %v960 = vpop.xlane.xlu0 %959
    %961 = vmax.xlane.f32.xlu0 %v893
    %v962 = vpop.xlane.xlu0 %961
    %963 = vmax.xlane.f32.xlu0 %v894
    %v964 = vpop.xlane.xlu0 %963
    %965 = vmax.xlane.f32.xlu0 %v895
    %v966 = vpop.xlane.xlu0 %965
    %967 = vmax.xlane.f32.xlu0 %v896
    %v968 = vpop.xlane.xlu0 %967
    %969 = vmax.xlane.f32.xlu0 %v897
    %v970 = vpop.xlane.xlu0 %969
    %971 = vmax.xlane.f32.xlu0 %v898
    %v972 = vpop.xlane.xlu0 %971
    %973 = vmax.xlane.f32.xlu0 %v899
    %v974 = vpop.xlane.xlu0 %973
    %975 = vmax.xlane.f32.xlu0 %v900
    %v976 = vpop.xlane.xlu0 %975
    %977 = vmax.xlane.f32.xlu0 %v901
    %v978 = vpop.xlane.xlu0 %977
    %979 = vmax.xlane.f32.xlu0 %v902
    %v980 = vpop.xlane.xlu0 %979
    %981 = vmax.xlane.f32.xlu0 %v903
    %v982 = vpop.xlane.xlu0 %981
    %983 = vmax.xlane.f32.xlu0 %v904
    %v984 = vpop.xlane.xlu0 %983
    %985 = vmax.xlane.f32.xlu0 %v905
    %v986 = vpop.xlane.xlu0 %985
    %987 = vmax.xlane.f32.xlu0 %v906
    %v988 = vpop.xlane.xlu0 %987
    %989 = vmax.xlane.f32.xlu0 %v907
    %v990 = vpop.xlane.xlu0 %989
    %991 = vmax.xlane.f32.xlu0 %v908
    %v992 = vpop.xlane.xlu0 %991
    %993 = vmax.xlane.f32.xlu0 %v909
    %v994 = vpop.xlane.xlu0 %993
    %995 = vmax.xlane.f32.xlu0 %v910
    %v996 = vpop.xlane.xlu0 %995
    %997 = vmax.xlane.f32.xlu0 %v911
    %v998 = vpop.xlane.xlu0 %997
    %999 = vmax.xlane.f32.xlu0 %v912
    %v1000 = vpop.xlane.xlu0 %999
    %1001 = vmax.xlane.f32.xlu0 %v913
    %v1002 = vpop.xlane.xlu0 %1001
    %1003 = vmax.xlane.f32.xlu0 %v914
    %v1004 = vpop.xlane.xlu0 %1003
    %1005 = vmax.xlane.f32.xlu0 %v915
    %v1006 = vpop.xlane.xlu0 %1005
    %1007 = vmax.xlane.f32.xlu0 %v916
    %v1008 = vpop.xlane.xlu0 %1007
    %1009 = vmax.xlane.f32.xlu0 %v917
    %v1010 = vpop.xlane.xlu0 %1009
    %1011 = vmax.xlane.f32.xlu0 %v918
    %v1012 = vpop.xlane.xlu0 %1011
    %1013 = vmax.xlane.f32.xlu0 %v919
    %v1014 = vpop.xlane.xlu0 %1013
    %1015 = vmax.xlane.f32.xlu0 %v920
    %v1016 = vpop.xlane.xlu0 %1015
    %1017 = vmax.xlane.f32.xlu0 %v921
    %v1018 = vpop.xlane.xlu0 %1017
    %1019 = vmax.xlane.f32.xlu0 %v922
    %v1020 = vpop.xlane.xlu0 %1019
    %1021 = vmax.xlane.f32.xlu0 %v923
    %v1022 = vpop.xlane.xlu0 %1021
    %1023 = vmax.xlane.f32.xlu0 %v924
    %v1024 = vpop.xlane.xlu0 %1023
    %1025 = vmax.xlane.f32.xlu0 %v925
    %v1026 = vpop.xlane.xlu0 %1025
    %1027 = vmax.xlane.f32.xlu0 %v926
    %v1028 = vpop.xlane.xlu0 %1027
    %1029 = vmax.xlane.f32.xlu0 %v927
    %v1030 = vpop.xlane.xlu0 %1029
    %1031 = vmax.xlane.f32.xlu0 %v928
    %v1032 = vpop.xlane.xlu0 %1031
    %1033 = vmax.xlane.f32.xlu0 %v929
    %v1034 = vpop.xlane.xlu0 %1033
    %1035 = vmax.xlane.f32.xlu0 %v930
    %v1036 = vpop.xlane.xlu0 %1035
    %1037 = vmax.xlane.f32.xlu0 %v931
    %v1038 = vpop.xlane.xlu0 %1037
    %1039 = vmax.xlane.f32.xlu0 %v932
    %v1040 = vpop.xlane.xlu0 %1039
    %1041 = vmax.xlane.f32.xlu0 %v933
    %v1042 = vpop.xlane.xlu0 %1041
    %1043 = vmax.xlane.f32.xlu0 %v934
    %v1044 = vpop.xlane.xlu0 %1043
    %1045 = vmax.xlane.f32.xlu0 %v935
    %v1046 = vpop.xlane.xlu0 %1045
    %1047 = vmax.xlane.f32.xlu0 %v936
    %v1048 = vpop.xlane.xlu0 %1047
    %1049 = vmax.xlane.f32.xlu0 %v937
    %v1050 = vpop.xlane.xlu0 %1049
    %1051 = vmax.xlane.f32.xlu0 %v938
    %v1052 = vpop.xlane.xlu0 %1051
    %1053 = vmax.xlane.f32.xlu0 %v939
    %v1054 = vpop.xlane.xlu0 %1053
    %1055 = vmax.xlane.f32.xlu0 %v940
    %v1056 = vpop.xlane.xlu0 %1055
    %1057 = vmax.xlane.f32.xlu0 %v941
    %v1058 = vpop.xlane.xlu0 %1057
    %1059 = vmax.xlane.f32.xlu0 %v942
    %v1060 = vpop.xlane.xlu0 %1059
    %1061 = vmax.xlane.f32.xlu0 %v943
    %v1062 = vpop.xlane.xlu0 %1061
    %1063 = vmax.xlane.f32.xlu0 %v944
    %v1064 = vpop.xlane.xlu0 %1063
    %1065 = vmax.xlane.f32.xlu0 %v945
    %v1066 = vpop.xlane.xlu0 %1065
    %1067 = vmax.xlane.f32.xlu0 %v946
    %v1068 = vpop.xlane.xlu0 %1067
    %1069 = vmax.xlane.f32.xlu0 %v947
    %v1070 = vpop.xlane.xlu0 %1069
    %1071 = vmax.xlane.f32.xlu0 %v948
    %v1072 = vpop.xlane.xlu0 %1071
    %1073 = vmax.xlane.f32.xlu0 %v949
    %v1074 = vpop.xlane.xlu0 %1073
    %1075 = vmax.xlane.f32.xlu0 %v950
    %v1076 = vpop.xlane.xlu0 %1075
    %1077 = vmax.xlane.f32.xlu0 %v951
    %v1078 = vpop.xlane.xlu0 %1077
    %1079 = vmax.xlane.f32.xlu0 %v952
    %v1080 = vpop.xlane.xlu0 %1079
    %v1081 = vsub.f32 %v889, %v954
    %v1082 = vsub.f32 %v890, %v956
    %v1083 = vsub.f32 %v891, %v958
    %v1084 = vsub.f32 %v892, %v960
    %v1085 = vsub.f32 %v893, %v962
    %v1086 = vsub.f32 %v894, %v964
    %v1087 = vsub.f32 %v895, %v966
    %v1088 = vsub.f32 %v896, %v968
    %v1089 = vsub.f32 %v897, %v970
    %v1090 = vsub.f32 %v898, %v972
    %v1091 = vsub.f32 %v899, %v974
    %v1092 = vsub.f32 %v900, %v976
    %v1093 = vsub.f32 %v901, %v978
    %v1094 = vsub.f32 %v902, %v980
    %v1095 = vsub.f32 %v903, %v982
    %v1096 = vsub.f32 %v904, %v984
    %v1097 = vsub.f32 %v905, %v986
    %v1098 = vsub.f32 %v906, %v988
    %v1099 = vsub.f32 %v907, %v990
    %v1100 = vsub.f32 %v908, %v992
    %v1101 = vsub.f32 %v909, %v994
    %v1102 = vsub.f32 %v910, %v996
    %v1103 = vsub.f32 %v911, %v998
    %v1104 = vsub.f32 %v912, %v1000
    %v1105 = vsub.f32 %v913, %v1002
    %v1106 = vsub.f32 %v914, %v1004
    %v1107 = vsub.f32 %v915, %v1006
    %v1108 = vsub.f32 %v916, %v1008
    %v1109 = vsub.f32 %v917, %v1010
    %v1110 = vsub.f32 %v918, %v1012
    %v1111 = vsub.f32 %v919, %v1014
    %v1112 = vsub.f32 %v920, %v1016
    %v1113 = vsub.f32 %v921, %v1018
    %v1114 = vsub.f32 %v922, %v1020
    %v1115 = vsub.f32 %v923, %v1022
    %v1116 = vsub.f32 %v924, %v1024
    %v1117 = vsub.f32 %v925, %v1026
    %v1118 = vsub.f32 %v926, %v1028
    %v1119 = vsub.f32 %v927, %v1030
    %v1120 = vsub.f32 %v928, %v1032
    %v1121 = vsub.f32 %v929, %v1034
    %v1122 = vsub.f32 %v930, %v1036
    %v1123 = vsub.f32 %v931, %v1038
    %v1124 = vsub.f32 %v932, %v1040
    %v1125 = vsub.f32 %v933, %v1042
    %v1126 = vsub.f32 %v934, %v1044
    %v1127 = vsub.f32 %v935, %v1046
    %v1128 = vsub.f32 %v936, %v1048
    %v1129 = vsub.f32 %v937, %v1050
    %v1130 = vsub.f32 %v938, %v1052
    %v1131 = vsub.f32 %v939, %v1054
    %v1132 = vsub.f32 %v940, %v1056
    %v1133 = vsub.f32 %v941, %v1058
    %v1134 = vsub.f32 %v942, %v1060
    %v1135 = vsub.f32 %v943, %v1062
    %v1136 = vsub.f32 %v944, %v1064
    %v1137 = vsub.f32 %v945, %v1066
    %v1138 = vsub.f32 %v946, %v1068
    %v1139 = vsub.f32 %v947, %v1070
    %v1140 = vsub.f32 %v948, %v1072
    %v1141 = vsub.f32 %v949, %v1074
    %v1142 = vsub.f32 %v950, %v1076
    %v1143 = vsub.f32 %v951, %v1078
    %v1144 = vsub.f32 %v952, %v1080
    %v1145 = vmul.f32 %v1081, 1.442695
    %v1146 = vpow.pop %v1145
    %v1147 = vmul.f32 %v1082, 1.442695
    %v1148 = vpow.pop %v1147
    %v1149 = vmul.f32 %v1083, 1.442695
    %v1150 = vpow.pop %v1149
    %v1151 = vmul.f32 %v1084, 1.442695
    %v1152 = vpow.pop %v1151
    %v1153 = vmul.f32 %v1085, 1.442695
    %v1154 = vpow.pop %v1153
    %v1155 = vmul.f32 %v1086, 1.442695
    %v1156 = vpow.pop %v1155
    %v1157 = vmul.f32 %v1087, 1.442695
    %v1158 = vpow.pop %v1157
    %v1159 = vmul.f32 %v1088, 1.442695
    %v1160 = vpow.pop %v1159
    %v1161 = vmul.f32 %v1089, 1.442695
    %v1162 = vpow.pop %v1161
    %v1163 = vmul.f32 %v1090, 1.442695
    %v1164 = vpow.pop %v1163
    %v1165 = vmul.f32 %v1091, 1.442695
    %v1166 = vpow.pop %v1165
    %v1167 = vmul.f32 %v1092, 1.442695
    %v1168 = vpow.pop %v1167
    %v1169 = vmul.f32 %v1093, 1.442695
    %v1170 = vpow.pop %v1169
    %v1171 = vmul.f32 %v1094, 1.442695
    %v1172 = vpow.pop %v1171
    %v1173 = vmul.f32 %v1095, 1.442695
    %v1174 = vpow.pop %v1173
    %v1175 = vmul.f32 %v1096, 1.442695
    %v1176 = vpow.pop %v1175
    %v1177 = vmul.f32 %v1097, 1.442695
    %v1178 = vpow.pop %v1177
    %v1179 = vmul.f32 %v1098, 1.442695
    %v1180 = vpow.pop %v1179
    %v1181 = vmul.f32 %v1099, 1.442695
    %v1182 = vpow.pop %v1181
    %v1183 = vmul.f32 %v1100, 1.442695
    %v1184 = vpow.pop %v1183
    %v1185 = vmul.f32 %v1101, 1.442695
    %v1186 = vpow.pop %v1185
    %v1187 = vmul.f32 %v1102, 1.442695
    %v1188 = vpow.pop %v1187
    %v1189 = vmul.f32 %v1103, 1.442695
    %v1190 = vpow.pop %v1189
    %v1191 = vmul.f32 %v1104, 1.442695
    %v1192 = vpow.pop %v1191
    %v1193 = vmul.f32 %v1105, 1.442695
    %v1194 = vpow.pop %v1193
    %v1195 = vmul.f32 %v1106, 1.442695
    %v1196 = vpow.pop %v1195
    %v1197 = vmul.f32 %v1107, 1.442695
    %v1198 = vpow.pop %v1197
    %v1199 = vmul.f32 %v1108, 1.442695
    %v1200 = vpow.pop %v1199
    %v1201 = vmul.f32 %v1109, 1.442695
    %v1202 = vpow.pop %v1201
    %v1203 = vmul.f32 %v1110, 1.442695
    %v1204 = vpow.pop %v1203
    %v1205 = vmul.f32 %v1111, 1.442695
    %v1206 = vpow.pop %v1205
    %v1207 = vmul.f32 %v1112, 1.442695
    %v1208 = vpow.pop %v1207
    %v1209 = vmul.f32 %v1113, 1.442695
    %v1210 = vpow.pop %v1209
    %v1211 = vmul.f32 %v1114, 1.442695
    %v1212 = vpow.pop %v1211
    %v1213 = vmul.f32 %v1115, 1.442695
    %v1214 = vpow.pop %v1213
    %v1215 = vmul.f32 %v1116, 1.442695
    %v1216 = vpow.pop %v1215
    %v1217 = vmul.f32 %v1117, 1.442695
    %v1218 = vpow.pop %v1217
    %v1219 = vmul.f32 %v1118, 1.442695
    %v1220 = vpow.pop %v1219
    %v1221 = vmul.f32 %v1119, 1.442695
    %v1222 = vpow.pop %v1221
    %v1223 = vmul.f32 %v1120, 1.442695
    %v1224 = vpow.pop %v1223
    %v1225 = vmul.f32 %v1121, 1.442695
    %v1226 = vpow.pop %v1225
    %v1227 = vmul.f32 %v1122, 1.442695
    %v1228 = vpow.pop %v1227
    %v1229 = vmul.f32 %v1123, 1.442695
    %v1230 = vpow.pop %v1229
    %v1231 = vmul.f32 %v1124, 1.442695
    %v1232 = vpow.pop %v1231
    %v1233 = vmul.f32 %v1125, 1.442695
    %v1234 = vpow.pop %v1233
    %v1235 = vmul.f32 %v1126, 1.442695
    %v1236 = vpow.pop %v1235
    %v1237 = vmul.f32 %v1127, 1.442695
    %v1238 = vpow.pop %v1237
    %v1239 = vmul.f32 %v1128, 1.442695
    %v1240 = vpow.pop %v1239
    %v1241 = vmul.f32 %v1129, 1.442695
    %v1242 = vpow.pop %v1241
    %v1243 = vmul.f32 %v1130, 1.442695
    %v1244 = vpow.pop %v1243
    %v1245 = vmul.f32 %v1131, 1.442695
    %v1246 = vpow.pop %v1245
    %v1247 = vmul.f32 %v1132, 1.442695
    %v1248 = vpow.pop %v1247
    %v1249 = vmul.f32 %v1133, 1.442695
    %v1250 = vpow.pop %v1249
    %v1251 = vmul.f32 %v1134, 1.442695
    %v1252 = vpow.pop %v1251
    %v1253 = vmul.f32 %v1135, 1.442695
    %v1254 = vpow.pop %v1253
    %v1255 = vmul.f32 %v1136, 1.442695
    %v1256 = vpow.pop %v1255
    %v1257 = vmul.f32 %v1137, 1.442695
    %v1258 = vpow.pop %v1257
    %v1259 = vmul.f32 %v1138, 1.442695
    %v1260 = vpow.pop %v1259
    %v1261 = vmul.f32 %v1139, 1.442695
    %v1262 = vpow.pop %v1261
    %v1263 = vmul.f32 %v1140, 1.442695
    %v1264 = vpow.pop %v1263
    %v1265 = vmul.f32 %v1141, 1.442695
    %v1266 = vpow.pop %v1265
    %v1267 = vmul.f32 %v1142, 1.442695
    %v1268 = vpow.pop %v1267
    %v1269 = vmul.f32 %v1143, 1.442695
    %v1270 = vpow.pop %v1269
    %v1271 = vmul.f32 %v1144, 1.442695
    %v1272 = vpow.pop %v1271
    %1273 = vadd.xlane.f32.xlu0 %v1146
    %v1274 = vpop.xlane.xlu0 %1273
    %1275 = vadd.xlane.f32.xlu0 %v1148
    %v1276 = vpop.xlane.xlu0 %1275
    %1277 = vadd.xlane.f32.xlu0 %v1150
    %v1278 = vpop.xlane.xlu0 %1277
    %1279 = vadd.xlane.f32.xlu0 %v1152
    %v1280 = vpop.xlane.xlu0 %1279
    %1281 = vadd.xlane.f32.xlu0 %v1154
    %v1282 = vpop.xlane.xlu0 %1281
    %1283 = vadd.xlane.f32.xlu0 %v1156
    %v1284 = vpop.xlane.xlu0 %1283
    %1285 = vadd.xlane.f32.xlu0 %v1158
    %v1286 = vpop.xlane.xlu0 %1285
    %1287 = vadd.xlane.f32.xlu0 %v1160
    %v1288 = vpop.xlane.xlu0 %1287
    %1289 = vadd.xlane.f32.xlu0 %v1162
    %v1290 = vpop.xlane.xlu0 %1289
    %1291 = vadd.xlane.f32.xlu0 %v1164
    %v1292 = vpop.xlane.xlu0 %1291
    %1293 = vadd.xlane.f32.xlu0 %v1166
    %v1294 = vpop.xlane.xlu0 %1293
    %1295 = vadd.xlane.f32.xlu0 %v1168
    %v1296 = vpop.xlane.xlu0 %1295
    %1297 = vadd.xlane.f32.xlu0 %v1170
    %v1298 = vpop.xlane.xlu0 %1297
    %1299 = vadd.xlane.f32.xlu0 %v1172
    %v1300 = vpop.xlane.xlu0 %1299
    %1301 = vadd.xlane.f32.xlu0 %v1174
    %v1302 = vpop.xlane.xlu0 %1301
    %1303 = vadd.xlane.f32.xlu0 %v1176
    %v1304 = vpop.xlane.xlu0 %1303
    %1305 = vadd.xlane.f32.xlu0 %v1178
    %v1306 = vpop.xlane.xlu0 %1305
    %1307 = vadd.xlane.f32.xlu0 %v1180
    %v1308 = vpop.xlane.xlu0 %1307
    %1309 = vadd.xlane.f32.xlu0 %v1182
    %v1310 = vpop.xlane.xlu0 %1309
    %1311 = vadd.xlane.f32.xlu0 %v1184
    %v1312 = vpop.xlane.xlu0 %1311
    %1313 = vadd.xlane.f32.xlu0 %v1186
    %v1314 = vpop.xlane.xlu0 %1313
    %1315 = vadd.xlane.f32.xlu0 %v1188
    %v1316 = vpop.xlane.xlu0 %1315
    %1317 = vadd.xlane.f32.xlu0 %v1190
    %v1318 = vpop.xlane.xlu0 %1317
    %1319 = vadd.xlane.f32.xlu0 %v1192
    %v1320 = vpop.xlane.xlu0 %1319
    %1321 = vadd.xlane.f32.xlu0 %v1194
    %v1322 = vpop.xlane.xlu0 %1321
    %1323 = vadd.xlane.f32.xlu0 %v1196
    %v1324 = vpop.xlane.xlu0 %1323
    %1325 = vadd.xlane.f32.xlu0 %v1198
    %v1326 = vpop.xlane.xlu0 %1325
    %1327 = vadd.xlane.f32.xlu0 %v1200
    %v1328 = vpop.xlane.xlu0 %1327
    %1329 = vadd.xlane.f32.xlu0 %v1202
    %v1330 = vpop.xlane.xlu0 %1329
    %1331 = vadd.xlane.f32.xlu0 %v1204
    %v1332 = vpop.xlane.xlu0 %1331
    %1333 = vadd.xlane.f32.xlu0 %v1206
    %v1334 = vpop.xlane.xlu0 %1333
    %1335 = vadd.xlane.f32.xlu0 %v1208
    %v1336 = vpop.xlane.xlu0 %1335
    %1337 = vadd.xlane.f32.xlu0 %v1210
    %v1338 = vpop.xlane.xlu0 %1337
    %1339 = vadd.xlane.f32.xlu0 %v1212
    %v1340 = vpop.xlane.xlu0 %1339
    %1341 = vadd.xlane.f32.xlu0 %v1214
    %v1342 = vpop.xlane.xlu0 %1341
    %1343 = vadd.xlane.f32.xlu0 %v1216
    %v1344 = vpop.xlane.xlu0 %1343
    %1345 = vadd.xlane.f32.xlu0 %v1218
    %v1346 = vpop.xlane.xlu0 %1345
    %1347 = vadd.xlane.f32.xlu0 %v1220
    %v1348 = vpop.xlane.xlu0 %1347
    %1349 = vadd.xlane.f32.xlu0 %v1222
    %v1350 = vpop.xlane.xlu0 %1349
    %1351 = vadd.xlane.f32.xlu0 %v1224
    %v1352 = vpop.xlane.xlu0 %1351
    %1353 = vadd.xlane.f32.xlu0 %v1226
    %v1354 = vpop.xlane.xlu0 %1353
    %1355 = vadd.xlane.f32.xlu0 %v1228
    %v1356 = vpop.xlane.xlu0 %1355
    %1357 = vadd.xlane.f32.xlu0 %v1230
    %v1358 = vpop.xlane.xlu0 %1357
    %1359 = vadd.xlane.f32.xlu0 %v1232
    %v1360 = vpop.xlane.xlu0 %1359
    %1361 = vadd.xlane.f32.xlu0 %v1234
    %v1362 = vpop.xlane.xlu0 %1361
    %1363 = vadd.xlane.f32.xlu0 %v1236
    %v1364 = vpop.xlane.xlu0 %1363
    %1365 = vadd.xlane.f32.xlu0 %v1238
    %v1366 = vpop.xlane.xlu0 %1365
    %1367 = vadd.xlane.f32.xlu0 %v1240
    %v1368 = vpop.xlane.xlu0 %1367
    %1369 = vadd.xlane.f32.xlu0 %v1242
    %v1370 = vpop.xlane.xlu0 %1369
    %1371 = vadd.xlane.f32.xlu0 %v1244
    %v1372 = vpop.xlane.xlu0 %1371
    %1373 = vadd.xlane.f32.xlu0 %v1246
    %v1374 = vpop.xlane.xlu0 %1373
    %1375 = vadd.xlane.f32.xlu0 %v1248
    %v1376 = vpop.xlane.xlu0 %1375
    %1377 = vadd.xlane.f32.xlu0 %v1250
    %v1378 = vpop.xlane.xlu0 %1377
    %1379 = vadd.xlane.f32.xlu0 %v1252
    %v1380 = vpop.xlane.xlu0 %1379
    %1381 = vadd.xlane.f32.xlu0 %v1254
    %v1382 = vpop.xlane.xlu0 %1381
    %1383 = vadd.xlane.f32.xlu0 %v1256
    %v1384 = vpop.xlane.xlu0 %1383
    %1385 = vadd.xlane.f32.xlu0 %v1258
    %v1386 = vpop.xlane.xlu0 %1385
    %1387 = vadd.xlane.f32.xlu0 %v1260
    %v1388 = vpop.xlane.xlu0 %1387
    %1389 = vadd.xlane.f32.xlu0 %v1262
    %v1390 = vpop.xlane.xlu0 %1389
    %1391 = vadd.xlane.f32.xlu0 %v1264
    %v1392 = vpop.xlane.xlu0 %1391
    %1393 = vadd.xlane.f32.xlu0 %v1266
    %v1394 = vpop.xlane.xlu0 %1393
    %1395 = vadd.xlane.f32.xlu0 %v1268
    %v1396 = vpop.xlane.xlu0 %1395
    %1397 = vadd.xlane.f32.xlu0 %v1270
    %v1398 = vpop.xlane.xlu0 %1397
    %1399 = vadd.xlane.f32.xlu0 %v1272
    %v1400 = vpop.xlane.xlu0 %1399
    %v1401 = vmul.f32 %v1146, %v825
    %v1402 = vmul.f32 %v1148, %v826
    %v1403 = vmul.f32 %v1150, %v827
    %v1404 = vmul.f32 %v1152, %v828
    %v1405 = vmul.f32 %v1154, %v829
    %v1406 = vmul.f32 %v1156, %v830
    %v1407 = vmul.f32 %v1158, %v831
    %v1408 = vmul.f32 %v1160, %v832
    %v1409 = vmul.f32 %v1162, %v833
    %v1410 = vmul.f32 %v1164, %v834
    %v1411 = vmul.f32 %v1166, %v835
    %v1412 = vmul.f32 %v1168, %v836
    %v1413 = vmul.f32 %v1170, %v837
    %v1414 = vmul.f32 %v1172, %v838
    %v1415 = vmul.f32 %v1174, %v839
    %v1416 = vmul.f32 %v1176, %v840
    %v1417 = vmul.f32 %v1178, %v841
    %v1418 = vmul.f32 %v1180, %v842
    %v1419 = vmul.f32 %v1182, %v843
    %v1420 = vmul.f32 %v1184, %v844
    %v1421 = vmul.f32 %v1186, %v845
    %v1422 = vmul.f32 %v1188, %v846
    %v1423 = vmul.f32 %v1190, %v847
    %v1424 = vmul.f32 %v1192, %v848
    %v1425 = vmul.f32 %v1194, %v849
    %v1426 = vmul.f32 %v1196, %v850
    %v1427 = vmul.f32 %v1198, %v851
    %v1428 = vmul.f32 %v1200, %v852
    %v1429 = vmul.f32 %v1202, %v853
    %v1430 = vmul.f32 %v1204, %v854
    %v1431 = vmul.f32 %v1206, %v855
    %v1432 = vmul.f32 %v1208, %v856
    %v1433 = vmul.f32 %v1210, %v857
    %v1434 = vmul.f32 %v1212, %v858
    %v1435 = vmul.f32 %v1214, %v859
    %v1436 = vmul.f32 %v1216, %v860
    %v1437 = vmul.f32 %v1218, %v861
    %v1438 = vmul.f32 %v1220, %v862
    %v1439 = vmul.f32 %v1222, %v863
    %v1440 = vmul.f32 %v1224, %v864
    %v1441 = vmul.f32 %v1226, %v865
    %v1442 = vmul.f32 %v1228, %v866
    %v1443 = vmul.f32 %v1230, %v867
    %v1444 = vmul.f32 %v1232, %v868
    %v1445 = vmul.f32 %v1234, %v869
    %v1446 = vmul.f32 %v1236, %v870
    %v1447 = vmul.f32 %v1238, %v871
    %v1448 = vmul.f32 %v1240, %v872
    %v1449 = vmul.f32 %v1242, %v873
    %v1450 = vmul.f32 %v1244, %v874
    %v1451 = vmul.f32 %v1246, %v875
    %v1452 = vmul.f32 %v1248, %v876
    %v1453 = vmul.f32 %v1250, %v877
    %v1454 = vmul.f32 %v1252, %v878
    %v1455 = vmul.f32 %v1254, %v879
    %v1456 = vmul.f32 %v1256, %v880
    %v1457 = vmul.f32 %v1258, %v881
    %v1458 = vmul.f32 %v1260, %v882
    %v1459 = vmul.f32 %v1262, %v883
    %v1460 = vmul.f32 %v1264, %v884
    %v1461 = vmul.f32 %v1266, %v885
    %v1462 = vmul.f32 %v1268, %v886
    %v1463 = vmul.f32 %v1270, %v887
    %v1464 = vmul.f32 %v1272, %v888
    %1465 = vadd.xlane.f32.xlu0 %v1401
    %v1466 = vpop.xlane.xlu0 %1465
    %1467 = vadd.xlane.f32.xlu0 %v1402
    %v1468 = vpop.xlane.xlu0 %1467
    %1469 = vadd.xlane.f32.xlu0 %v1403
    %v1470 = vpop.xlane.xlu0 %1469
    %1471 = vadd.xlane.f32.xlu0 %v1404
    %v1472 = vpop.xlane.xlu0 %1471
    %1473 = vadd.xlane.f32.xlu0 %v1405
    %v1474 = vpop.xlane.xlu0 %1473
    %1475 = vadd.xlane.f32.xlu0 %v1406
    %v1476 = vpop.xlane.xlu0 %1475
    %1477 = vadd.xlane.f32.xlu0 %v1407
    %v1478 = vpop.xlane.xlu0 %1477
    %1479 = vadd.xlane.f32.xlu0 %v1408
    %v1480 = vpop.xlane.xlu0 %1479
    %1481 = vadd.xlane.f32.xlu0 %v1409
    %v1482 = vpop.xlane.xlu0 %1481
    %1483 = vadd.xlane.f32.xlu0 %v1410
    %v1484 = vpop.xlane.xlu0 %1483
    %1485 = vadd.xlane.f32.xlu0 %v1411
    %v1486 = vpop.xlane.xlu0 %1485
    %1487 = vadd.xlane.f32.xlu0 %v1412
    %v1488 = vpop.xlane.xlu0 %1487
    %1489 = vadd.xlane.f32.xlu0 %v1413
    %v1490 = vpop.xlane.xlu0 %1489
    %1491 = vadd.xlane.f32.xlu0 %v1414
    %v1492 = vpop.xlane.xlu0 %1491
    %1493 = vadd.xlane.f32.xlu0 %v1415
    %v1494 = vpop.xlane.xlu0 %1493
    %1495 = vadd.xlane.f32.xlu0 %v1416
    %v1496 = vpop.xlane.xlu0 %1495
    %1497 = vadd.xlane.f32.xlu0 %v1417
    %v1498 = vpop.xlane.xlu0 %1497
    %1499 = vadd.xlane.f32.xlu0 %v1418
    %v1500 = vpop.xlane.xlu0 %1499
    %1501 = vadd.xlane.f32.xlu0 %v1419
    %v1502 = vpop.xlane.xlu0 %1501
    %1503 = vadd.xlane.f32.xlu0 %v1420
    %v1504 = vpop.xlane.xlu0 %1503
    %1505 = vadd.xlane.f32.xlu0 %v1421
    %v1506 = vpop.xlane.xlu0 %1505
    %1507 = vadd.xlane.f32.xlu0 %v1422
    %v1508 = vpop.xlane.xlu0 %1507
    %1509 = vadd.xlane.f32.xlu0 %v1423
    %v1510 = vpop.xlane.xlu0 %1509
    %1511 = vadd.xlane.f32.xlu0 %v1424
    %v1512 = vpop.xlane.xlu0 %1511
    %1513 = vadd.xlane.f32.xlu0 %v1425
    %v1514 = vpop.xlane.xlu0 %1513
    %1515 = vadd.xlane.f32.xlu0 %v1426
    %v1516 = vpop.xlane.xlu0 %1515
    %1517 = vadd.xlane.f32.xlu0 %v1427
    %v1518 = vpop.xlane.xlu0 %1517
    %1519 = vadd.xlane.f32.xlu0 %v1428
    %v1520 = vpop.xlane.xlu0 %1519
    %1521 = vadd.xlane.f32.xlu0 %v1429
    %v1522 = vpop.xlane.xlu0 %1521
    %1523 = vadd.xlane.f32.xlu0 %v1430
    %v1524 = vpop.xlane.xlu0 %1523
    %1525 = vadd.xlane.f32.xlu0 %v1431
    %v1526 = vpop.xlane.xlu0 %1525
    %1527 = vadd.xlane.f32.xlu0 %v1432
    %v1528 = vpop.xlane.xlu0 %1527
    %1529 = vadd.xlane.f32.xlu0 %v1433
    %v1530 = vpop.xlane.xlu0 %1529
    %1531 = vadd.xlane.f32.xlu0 %v1434
    %v1532 = vpop.xlane.xlu0 %1531
    %1533 = vadd.xlane.f32.xlu0 %v1435
    %v1534 = vpop.xlane.xlu0 %1533
    %1535 = vadd.xlane.f32.xlu0 %v1436
    %v1536 = vpop.xlane.xlu0 %1535
    %1537 = vadd.xlane.f32.xlu0 %v1437
    %v1538 = vpop.xlane.xlu0 %1537
    %1539 = vadd.xlane.f32.xlu0 %v1438
    %v1540 = vpop.xlane.xlu0 %1539
    %1541 = vadd.xlane.f32.xlu0 %v1439
    %v1542 = vpop.xlane.xlu0 %1541
    %1543 = vadd.xlane.f32.xlu0 %v1440
    %v1544 = vpop.xlane.xlu0 %1543
    %1545 = vadd.xlane.f32.xlu0 %v1441
    %v1546 = vpop.xlane.xlu0 %1545
    %1547 = vadd.xlane.f32.xlu0 %v1442
    %v1548 = vpop.xlane.xlu0 %1547
    %1549 = vadd.xlane.f32.xlu0 %v1443
    %v1550 = vpop.xlane.xlu0 %1549
    %1551 = vadd.xlane.f32.xlu0 %v1444
    %v1552 = vpop.xlane.xlu0 %1551
    %1553 = vadd.xlane.f32.xlu0 %v1445
    %v1554 = vpop.xlane.xlu0 %1553
    %1555 = vadd.xlane.f32.xlu0 %v1446
    %v1556 = vpop.xlane.xlu0 %1555
    %1557 = vadd.xlane.f32.xlu0 %v1447
    %v1558 = vpop.xlane.xlu0 %1557
    %1559 = vadd.xlane.f32.xlu0 %v1448
    %v1560 = vpop.xlane.xlu0 %1559
    %1561 = vadd.xlane.f32.xlu0 %v1449
    %v1562 = vpop.xlane.xlu0 %1561
    %1563 = vadd.xlane.f32.xlu0 %v1450
    %v1564 = vpop.xlane.xlu0 %1563
    %1565 = vadd.xlane.f32.xlu0 %v1451
    %v1566 = vpop.xlane.xlu0 %1565
    %1567 = vadd.xlane.f32.xlu0 %v1452
    %v1568 = vpop.xlane.xlu0 %1567
    %1569 = vadd.xlane.f32.xlu0 %v1453
    %v1570 = vpop.xlane.xlu0 %1569
    %1571 = vadd.xlane.f32.xlu0 %v1454
    %v1572 = vpop.xlane.xlu0 %1571
    %1573 = vadd.xlane.f32.xlu0 %v1455
    %v1574 = vpop.xlane.xlu0 %1573
    %1575 = vadd.xlane.f32.xlu0 %v1456
    %v1576 = vpop.xlane.xlu0 %1575
    %1577 = vadd.xlane.f32.xlu0 %v1457
    %v1578 = vpop.xlane.xlu0 %1577
    %1579 = vadd.xlane.f32.xlu0 %v1458
    %v1580 = vpop.xlane.xlu0 %1579
    %1581 = vadd.xlane.f32.xlu0 %v1459
    %v1582 = vpop.xlane.xlu0 %1581
    %1583 = vadd.xlane.f32.xlu0 %v1460
    %v1584 = vpop.xlane.xlu0 %1583
    %1585 = vadd.xlane.f32.xlu0 %v1461
    %v1586 = vpop.xlane.xlu0 %1585
    %1587 = vadd.xlane.f32.xlu0 %v1462
    %v1588 = vpop.xlane.xlu0 %1587
    %1589 = vadd.xlane.f32.xlu0 %v1463
    %v1590 = vpop.xlane.xlu0 %1589
    %1591 = vadd.xlane.f32.xlu0 %v1464
    %v1592 = vpop.xlane.xlu0 %1591
    %v1593 = vsub.f32 %v1274, %v1466
    %v1594 = vsub.f32 %v1276, %v1468
    %v1595 = vsub.f32 %v1278, %v1470
    %v1596 = vsub.f32 %v1280, %v1472
    %v1597 = vsub.f32 %v1282, %v1474
    %v1598 = vsub.f32 %v1284, %v1476
    %v1599 = vsub.f32 %v1286, %v1478
    %v1600 = vsub.f32 %v1288, %v1480
    %v1601 = vsub.f32 %v1290, %v1482
    %v1602 = vsub.f32 %v1292, %v1484
    %v1603 = vsub.f32 %v1294, %v1486
    %v1604 = vsub.f32 %v1296, %v1488
    %v1605 = vsub.f32 %v1298, %v1490
    %v1606 = vsub.f32 %v1300, %v1492
    %v1607 = vsub.f32 %v1302, %v1494
    %v1608 = vsub.f32 %v1304, %v1496
    %v1609 = vsub.f32 %v1306, %v1498
    %v1610 = vsub.f32 %v1308, %v1500
    %v1611 = vsub.f32 %v1310, %v1502
    %v1612 = vsub.f32 %v1312, %v1504
    %v1613 = vsub.f32 %v1314, %v1506
    %v1614 = vsub.f32 %v1316, %v1508
    %v1615 = vsub.f32 %v1318, %v1510
    %v1616 = vsub.f32 %v1320, %v1512
    %v1617 = vsub.f32 %v1322, %v1514
    %v1618 = vsub.f32 %v1324, %v1516
    %v1619 = vsub.f32 %v1326, %v1518
    %v1620 = vsub.f32 %v1328, %v1520
    %v1621 = vsub.f32 %v1330, %v1522
    %v1622 = vsub.f32 %v1332, %v1524
    %v1623 = vsub.f32 %v1334, %v1526
    %v1624 = vsub.f32 %v1336, %v1528
    %v1625 = vsub.f32 %v1338, %v1530
    %v1626 = vsub.f32 %v1340, %v1532
    %v1627 = vsub.f32 %v1342, %v1534
    %v1628 = vsub.f32 %v1344, %v1536
    %v1629 = vsub.f32 %v1346, %v1538
    %v1630 = vsub.f32 %v1348, %v1540
    %v1631 = vsub.f32 %v1350, %v1542
    %v1632 = vsub.f32 %v1352, %v1544
    %v1633 = vsub.f32 %v1354, %v1546
    %v1634 = vsub.f32 %v1356, %v1548
    %v1635 = vsub.f32 %v1358, %v1550
    %v1636 = vsub.f32 %v1360, %v1552
    %v1637 = vsub.f32 %v1362, %v1554
    %v1638 = vsub.f32 %v1364, %v1556
    %v1639 = vsub.f32 %v1366, %v1558
    %v1640 = vsub.f32 %v1368, %v1560
    %v1641 = vsub.f32 %v1370, %v1562
    %v1642 = vsub.f32 %v1372, %v1564
    %v1643 = vsub.f32 %v1374, %v1566
    %v1644 = vsub.f32 %v1376, %v1568
    %v1645 = vsub.f32 %v1378, %v1570
    %v1646 = vsub.f32 %v1380, %v1572
    %v1647 = vsub.f32 %v1382, %v1574
    %v1648 = vsub.f32 %v1384, %v1576
    %v1649 = vsub.f32 %v1386, %v1578
    %v1650 = vsub.f32 %v1388, %v1580
    %v1651 = vsub.f32 %v1390, %v1582
    %v1652 = vsub.f32 %v1392, %v1584
    %v1653 = vsub.f32 %v1394, %v1586
    %v1654 = vsub.f32 %v1396, %v1588
    %v1655 = vsub.f32 %v1398, %v1590
    %v1656 = vsub.f32 %v1400, %v1592
    %v1657 = vadd.f32 %v1146, %v1593
    %v1658 = vadd.f32 %v1148, %v1594
    %v1659 = vadd.f32 %v1150, %v1595
    %v1660 = vadd.f32 %v1152, %v1596
    %v1661 = vadd.f32 %v1154, %v1597
    %v1662 = vadd.f32 %v1156, %v1598
    %v1663 = vadd.f32 %v1158, %v1599
    %v1664 = vadd.f32 %v1160, %v1600
    %v1665 = vadd.f32 %v1162, %v1601
    %v1666 = vadd.f32 %v1164, %v1602
    %v1667 = vadd.f32 %v1166, %v1603
    %v1668 = vadd.f32 %v1168, %v1604
    %v1669 = vadd.f32 %v1170, %v1605
    %v1670 = vadd.f32 %v1172, %v1606
    %v1671 = vadd.f32 %v1174, %v1607
    %v1672 = vadd.f32 %v1176, %v1608
    %v1673 = vadd.f32 %v1178, %v1609
    %v1674 = vadd.f32 %v1180, %v1610
    %v1675 = vadd.f32 %v1182, %v1611
    %v1676 = vadd.f32 %v1184, %v1612
    %v1677 = vadd.f32 %v1186, %v1613
    %v1678 = vadd.f32 %v1188, %v1614
    %v1679 = vadd.f32 %v1190, %v1615
    %v1680 = vadd.f32 %v1192, %v1616
    %v1681 = vadd.f32 %v1194, %v1617
    %v1682 = vadd.f32 %v1196, %v1618
    %v1683 = vadd.f32 %v1198, %v1619
    %v1684 = vadd.f32 %v1200, %v1620
    %v1685 = vadd.f32 %v1202, %v1621
    %v1686 = vadd.f32 %v1204, %v1622
    %v1687 = vadd.f32 %v1206, %v1623
    %v1688 = vadd.f32 %v1208, %v1624
    %v1689 = vadd.f32 %v1210, %v1625
    %v1690 = vadd.f32 %v1212, %v1626
    %v1691 = vadd.f32 %v1214, %v1627
    %v1692 = vadd.f32 %v1216, %v1628
    %v1693 = vadd.f32 %v1218, %v1629
    %v1694 = vadd.f32 %v1220, %v1630
    %v1695 = vadd.f32 %v1222, %v1631
    %v1696 = vadd.f32 %v1224, %v1632
    %v1697 = vadd.f32 %v1226, %v1633
    %v1698 = vadd.f32 %v1228, %v1634
    %v1699 = vadd.f32 %v1230, %v1635
    %v1700 = vadd.f32 %v1232, %v1636
    %v1701 = vadd.f32 %v1234, %v1637
    %v1702 = vadd.f32 %v1236, %v1638
    %v1703 = vadd.f32 %v1238, %v1639
    %v1704 = vadd.f32 %v1240, %v1640
    %v1705 = vadd.f32 %v1242, %v1641
    %v1706 = vadd.f32 %v1244, %v1642
    %v1707 = vadd.f32 %v1246, %v1643
    %v1708 = vadd.f32 %v1248, %v1644
    %v1709 = vadd.f32 %v1250, %v1645
    %v1710 = vadd.f32 %v1252, %v1646
    %v1711 = vadd.f32 %v1254, %v1647
    %v1712 = vadd.f32 %v1256, %v1648
    %v1713 = vadd.f32 %v1258, %v1649
    %v1714 = vadd.f32 %v1260, %v1650
    %v1715 = vadd.f32 %v1262, %v1651
    %v1716 = vadd.f32 %v1264, %v1652
    %v1717 = vadd.f32 %v1266, %v1653
    %v1718 = vadd.f32 %v1268, %v1654
    %v1719 = vadd.f32 %v1270, %v1655
    %v1720 = vadd.f32 %v1272, %v1656
    %v1721 = vlog2.pop %v1657
    %v1722 = vmul.f32 %v1721, 0.6931472
    %v1723 = vlog2.pop %v1658
    %v1724 = vmul.f32 %v1723, 0.6931472
    %v1725 = vlog2.pop %v1659
    %v1726 = vmul.f32 %v1725, 0.6931472
    %v1727 = vlog2.pop %v1660
    %v1728 = vmul.f32 %v1727, 0.6931472
    %v1729 = vlog2.pop %v1661
    %v1730 = vmul.f32 %v1729, 0.6931472
    %v1731 = vlog2.pop %v1662
    %v1732 = vmul.f32 %v1731, 0.6931472
    %v1733 = vlog2.pop %v1663
    %v1734 = vmul.f32 %v1733, 0.6931472
    %v1735 = vlog2.pop %v1664
    %v1736 = vmul.f32 %v1735, 0.6931472
    %v1737 = vlog2.pop %v1665
    %v1738 = vmul.f32 %v1737, 0.6931472
    %v1739 = vlog2.pop %v1666
    %v1740 = vmul.f32 %v1739, 0.6931472
    %v1741 = vlog2.pop %v1667
    %v1742 = vmul.f32 %v1741, 0.6931472
    %v1743 = vlog2.pop %v1668
    %v1744 = vmul.f32 %v1743, 0.6931472
    %v1745 = vlog2.pop %v1669
    %v1746 = vmul.f32 %v1745, 0.6931472
    %v1747 = vlog2.pop %v1670
    %v1748 = vmul.f32 %v1747, 0.6931472
    %v1749 = vlog2.pop %v1671
    %v1750 = vmul.f32 %v1749, 0.6931472
    %v1751 = vlog2.pop %v1672
    %v1752 = vmul.f32 %v1751, 0.6931472
    %v1753 = vlog2.pop %v1673
    %v1754 = vmul.f32 %v1753, 0.6931472
    %v1755 = vlog2.pop %v1674
    %v1756 = vmul.f32 %v1755, 0.6931472
    %v1757 = vlog2.pop %v1675
    %v1758 = vmul.f32 %v1757, 0.6931472
    %v1759 = vlog2.pop %v1676
    %v1760 = vmul.f32 %v1759, 0.6931472
    %v1761 = vlog2.pop %v1677
    %v1762 = vmul.f32 %v1761, 0.6931472
    %v1763 = vlog2.pop %v1678
    %v1764 = vmul.f32 %v1763, 0.6931472
    %v1765 = vlog2.pop %v1679
    %v1766 = vmul.f32 %v1765, 0.6931472
    %v1767 = vlog2.pop %v1680
    %v1768 = vmul.f32 %v1767, 0.6931472
    %v1769 = vlog2.pop %v1681
    %v1770 = vmul.f32 %v1769, 0.6931472
    %v1771 = vlog2.pop %v1682
    %v1772 = vmul.f32 %v1771, 0.6931472
    %v1773 = vlog2.pop %v1683
    %v1774 = vmul.f32 %v1773, 0.6931472
    %v1775 = vlog2.pop %v1684
    %v1776 = vmul.f32 %v1775, 0.6931472
    %v1777 = vlog2.pop %v1685
    %v1778 = vmul.f32 %v1777, 0.6931472
    %v1779 = vlog2.pop %v1686
    %v1780 = vmul.f32 %v1779, 0.6931472
    %v1781 = vlog2.pop %v1687
    %v1782 = vmul.f32 %v1781, 0.6931472
    %v1783 = vlog2.pop %v1688
    %v1784 = vmul.f32 %v1783, 0.6931472
    %v1785 = vlog2.pop %v1689
    %v1786 = vmul.f32 %v1785, 0.6931472
    %v1787 = vlog2.pop %v1690
    %v1788 = vmul.f32 %v1787, 0.6931472
    %v1789 = vlog2.pop %v1691
    %v1790 = vmul.f32 %v1789, 0.6931472
    %v1791 = vlog2.pop %v1692
    %v1792 = vmul.f32 %v1791, 0.6931472
    %v1793 = vlog2.pop %v1693
    %v1794 = vmul.f32 %v1793, 0.6931472
    %v1795 = vlog2.pop %v1694
    %v1796 = vmul.f32 %v1795, 0.6931472
    %v1797 = vlog2.pop %v1695
    %v1798 = vmul.f32 %v1797, 0.6931472
    %v1799 = vlog2.pop %v1696
    %v1800 = vmul.f32 %v1799, 0.6931472
    %v1801 = vlog2.pop %v1697
    %v1802 = vmul.f32 %v1801, 0.6931472
    %v1803 = vlog2.pop %v1698
    %v1804 = vmul.f32 %v1803, 0.6931472
    %v1805 = vlog2.pop %v1699
    %v1806 = vmul.f32 %v1805, 0.6931472
    %v1807 = vlog2.pop %v1700
    %v1808 = vmul.f32 %v1807, 0.6931472
    %v1809 = vlog2.pop %v1701
    %v1810 = vmul.f32 %v1809, 0.6931472
    %v1811 = vlog2.pop %v1702
    %v1812 = vmul.f32 %v1811, 0.6931472
    %v1813 = vlog2.pop %v1703
    %v1814 = vmul.f32 %v1813, 0.6931472
    %v1815 = vlog2.pop %v1704
    %v1816 = vmul.f32 %v1815, 0.6931472
    %v1817 = vlog2.pop %v1705
    %v1818 = vmul.f32 %v1817, 0.6931472
    %v1819 = vlog2.pop %v1706
    %v1820 = vmul.f32 %v1819, 0.6931472
    %v1821 = vlog2.pop %v1707
    %v1822 = vmul.f32 %v1821, 0.6931472
    %v1823 = vlog2.pop %v1708
    %v1824 = vmul.f32 %v1823, 0.6931472
    %v1825 = vlog2.pop %v1709
    %v1826 = vmul.f32 %v1825, 0.6931472
    %v1827 = vlog2.pop %v1710
    %v1828 = vmul.f32 %v1827, 0.6931472
    %v1829 = vlog2.pop %v1711
    %v1830 = vmul.f32 %v1829, 0.6931472
    %v1831 = vlog2.pop %v1712
    %v1832 = vmul.f32 %v1831, 0.6931472
    %v1833 = vlog2.pop %v1713
    %v1834 = vmul.f32 %v1833, 0.6931472
    %v1835 = vlog2.pop %v1714
    %v1836 = vmul.f32 %v1835, 0.6931472
    %v1837 = vlog2.pop %v1715
    %v1838 = vmul.f32 %v1837, 0.6931472
    %v1839 = vlog2.pop %v1716
    %v1840 = vmul.f32 %v1839, 0.6931472
    %v1841 = vlog2.pop %v1717
    %v1842 = vmul.f32 %v1841, 0.6931472
    %v1843 = vlog2.pop %v1718
    %v1844 = vmul.f32 %v1843, 0.6931472
    %v1845 = vlog2.pop %v1719
    %v1846 = vmul.f32 %v1845, 0.6931472
    %v1847 = vlog2.pop %v1720
    %v1848 = vmul.f32 %v1847, 0.6931472
    %v1849 = vsub.f32 %v1081, %v1722
    %v1850 = vsub.f32 %v1082, %v1724
    %v1851 = vsub.f32 %v1083, %v1726
    %v1852 = vsub.f32 %v1084, %v1728
    %v1853 = vsub.f32 %v1085, %v1730
    %v1854 = vsub.f32 %v1086, %v1732
    %v1855 = vsub.f32 %v1087, %v1734
    %v1856 = vsub.f32 %v1088, %v1736
    %v1857 = vsub.f32 %v1089, %v1738
    %v1858 = vsub.f32 %v1090, %v1740
    %v1859 = vsub.f32 %v1091, %v1742
    %v1860 = vsub.f32 %v1092, %v1744
    %v1861 = vsub.f32 %v1093, %v1746
    %v1862 = vsub.f32 %v1094, %v1748
    %v1863 = vsub.f32 %v1095, %v1750
    %v1864 = vsub.f32 %v1096, %v1752
    %v1865 = vsub.f32 %v1097, %v1754
    %v1866 = vsub.f32 %v1098, %v1756
    %v1867 = vsub.f32 %v1099, %v1758
    %v1868 = vsub.f32 %v1100, %v1760
    %v1869 = vsub.f32 %v1101, %v1762
    %v1870 = vsub.f32 %v1102, %v1764
    %v1871 = vsub.f32 %v1103, %v1766
    %v1872 = vsub.f32 %v1104, %v1768
    %v1873 = vsub.f32 %v1105, %v1770
    %v1874 = vsub.f32 %v1106, %v1772
    %v1875 = vsub.f32 %v1107, %v1774
    %v1876 = vsub.f32 %v1108, %v1776
    %v1877 = vsub.f32 %v1109, %v1778
    %v1878 = vsub.f32 %v1110, %v1780
    %v1879 = vsub.f32 %v1111, %v1782
    %v1880 = vsub.f32 %v1112, %v1784
    %v1881 = vsub.f32 %v1113, %v1786
    %v1882 = vsub.f32 %v1114, %v1788
    %v1883 = vsub.f32 %v1115, %v1790
    %v1884 = vsub.f32 %v1116, %v1792
    %v1885 = vsub.f32 %v1117, %v1794
    %v1886 = vsub.f32 %v1118, %v1796
    %v1887 = vsub.f32 %v1119, %v1798
    %v1888 = vsub.f32 %v1120, %v1800
    %v1889 = vsub.f32 %v1121, %v1802
    %v1890 = vsub.f32 %v1122, %v1804
    %v1891 = vsub.f32 %v1123, %v1806
    %v1892 = vsub.f32 %v1124, %v1808
    %v1893 = vsub.f32 %v1125, %v1810
    %v1894 = vsub.f32 %v1126, %v1812
    %v1895 = vsub.f32 %v1127, %v1814
    %v1896 = vsub.f32 %v1128, %v1816
    %v1897 = vsub.f32 %v1129, %v1818
    %v1898 = vsub.f32 %v1130, %v1820
    %v1899 = vsub.f32 %v1131, %v1822
    %v1900 = vsub.f32 %v1132, %v1824
    %v1901 = vsub.f32 %v1133, %v1826
    %v1902 = vsub.f32 %v1134, %v1828
    %v1903 = vsub.f32 %v1135, %v1830
    %v1904 = vsub.f32 %v1136, %v1832
    %v1905 = vsub.f32 %v1137, %v1834
    %v1906 = vsub.f32 %v1138, %v1836
    %v1907 = vsub.f32 %v1139, %v1838
    %v1908 = vsub.f32 %v1140, %v1840
    %v1909 = vsub.f32 %v1141, %v1842
    %v1910 = vsub.f32 %v1142, %v1844
    %v1911 = vsub.f32 %v1143, %v1846
    %v1912 = vsub.f32 %v1144, %v1848
    %v1913 = vsel %vm697, %v1849, 0.0
    %v1914 = vsel %vm698, %v1850, 0.0
    %v1915 = vsel %vm699, %v1851, 0.0
    %v1916 = vsel %vm700, %v1852, 0.0
    %v1917 = vsel %vm701, %v1853, 0.0
    %v1918 = vsel %vm702, %v1854, 0.0
    %v1919 = vsel %vm703, %v1855, 0.0
    %v1920 = vsel %vm704, %v1856, 0.0
    %v1921 = vsel %vm705, %v1857, 0.0
    %v1922 = vsel %vm706, %v1858, 0.0
    %v1923 = vsel %vm707, %v1859, 0.0
    %v1924 = vsel %vm708, %v1860, 0.0
    %v1925 = vsel %vm709, %v1861, 0.0
    %v1926 = vsel %vm710, %v1862, 0.0
    %v1927 = vsel %vm711, %v1863, 0.0
    %v1928 = vsel %vm712, %v1864, 0.0
    %v1929 = vsel %vm713, %v1865, 0.0
    %v1930 = vsel %vm714, %v1866, 0.0
    %v1931 = vsel %vm715, %v1867, 0.0
    %v1932 = vsel %vm716, %v1868, 0.0
    %v1933 = vsel %vm717, %v1869, 0.0
    %v1934 = vsel %vm718, %v1870, 0.0
    %v1935 = vsel %vm719, %v1871, 0.0
    %v1936 = vsel %vm720, %v1872, 0.0
    %v1937 = vsel %vm721, %v1873, 0.0
    %v1938 = vsel %vm722, %v1874, 0.0
    %v1939 = vsel %vm723, %v1875, 0.0
    %v1940 = vsel %vm724, %v1876, 0.0
    %v1941 = vsel %vm725, %v1877, 0.0
    %v1942 = vsel %vm726, %v1878, 0.0
    %v1943 = vsel %vm727, %v1879, 0.0
    %v1944 = vsel %vm728, %v1880, 0.0
    %v1945 = vsel %vm729, %v1881, 0.0
    %v1946 = vsel %vm730, %v1882, 0.0
    %v1947 = vsel %vm731, %v1883, 0.0
    %v1948 = vsel %vm732, %v1884, 0.0
    %v1949 = vsel %vm733, %v1885, 0.0
    %v1950 = vsel %vm734, %v1886, 0.0
    %v1951 = vsel %vm735, %v1887, 0.0
    %v1952 = vsel %vm736, %v1888, 0.0
    %v1953 = vsel %vm737, %v1889, 0.0
    %v1954 = vsel %vm738, %v1890, 0.0
    %v1955 = vsel %vm739, %v1891, 0.0
    %v1956 = vsel %vm740, %v1892, 0.0
    %v1957 = vsel %vm741, %v1893, 0.0
    %v1958 = vsel %vm742, %v1894, 0.0
    %v1959 = vsel %vm743, %v1895, 0.0
    %v1960 = vsel %vm744, %v1896, 0.0
    %v1961 = vsel %vm745, %v1897, 0.0
    %v1962 = vsel %vm746, %v1898, 0.0
    %v1963 = vsel %vm747, %v1899, 0.0
    %v1964 = vsel %vm748, %v1900, 0.0
    %v1965 = vsel %vm749, %v1901, 0.0
    %v1966 = vsel %vm750, %v1902, 0.0
    %v1967 = vsel %vm751, %v1903, 0.0
    %v1968 = vsel %vm752, %v1904, 0.0
    %v1969 = vsel %vm753, %v1905, 0.0
    %v1970 = vsel %vm754, %v1906, 0.0
    %v1971 = vsel %vm755, %v1907, 0.0
    %v1972 = vsel %vm756, %v1908, 0.0
    %v1973 = vsel %vm757, %v1909, 0.0
    %v1974 = vsel %vm758, %v1910, 0.0
    %v1975 = vsel %vm759, %v1911, 0.0
    %v1976 = vsel %vm760, %v1912, 0.0
    %1977 = vadd.xlane.f32.xlu0 %v825
    %v1978 = vpop.xlane.xlu0 %1977
    %1979 = vadd.xlane.f32.xlu0 %v826
    %v1980 = vpop.xlane.xlu0 %1979
    %1981 = vadd.xlane.f32.xlu0 %v827
    %v1982 = vpop.xlane.xlu0 %1981
    %1983 = vadd.xlane.f32.xlu0 %v828
    %v1984 = vpop.xlane.xlu0 %1983
    %1985 = vadd.xlane.f32.xlu0 %v829
    %v1986 = vpop.xlane.xlu0 %1985
    %1987 = vadd.xlane.f32.xlu0 %v830
    %v1988 = vpop.xlane.xlu0 %1987
    %1989 = vadd.xlane.f32.xlu0 %v831
    %v1990 = vpop.xlane.xlu0 %1989
    %1991 = vadd.xlane.f32.xlu0 %v832
    %v1992 = vpop.xlane.xlu0 %1991
    %1993 = vadd.xlane.f32.xlu0 %v833
    %v1994 = vpop.xlane.xlu0 %1993
    %1995 = vadd.xlane.f32.xlu0 %v834
    %v1996 = vpop.xlane.xlu0 %1995
    %1997 = vadd.xlane.f32.xlu0 %v835
    %v1998 = vpop.xlane.xlu0 %1997
    %1999 = vadd.xlane.f32.xlu0 %v836
    %v2000 = vpop.xlane.xlu0 %1999
    %2001 = vadd.xlane.f32.xlu0 %v837
    %v2002 = vpop.xlane.xlu0 %2001
    %2003 = vadd.xlane.f32.xlu0 %v838
    %v2004 = vpop.xlane.xlu0 %2003
    %2005 = vadd.xlane.f32.xlu0 %v839
    %v2006 = vpop.xlane.xlu0 %2005
    %2007 = vadd.xlane.f32.xlu0 %v840
    %v2008 = vpop.xlane.xlu0 %2007
    %2009 = vadd.xlane.f32.xlu0 %v841
    %v2010 = vpop.xlane.xlu0 %2009
    %2011 = vadd.xlane.f32.xlu0 %v842
    %v2012 = vpop.xlane.xlu0 %2011
    %2013 = vadd.xlane.f32.xlu0 %v843
    %v2014 = vpop.xlane.xlu0 %2013
    %2015 = vadd.xlane.f32.xlu0 %v844
    %v2016 = vpop.xlane.xlu0 %2015
    %2017 = vadd.xlane.f32.xlu0 %v845
    %v2018 = vpop.xlane.xlu0 %2017
    %2019 = vadd.xlane.f32.xlu0 %v846
    %v2020 = vpop.xlane.xlu0 %2019
    %2021 = vadd.xlane.f32.xlu0 %v847
    %v2022 = vpop.xlane.xlu0 %2021
    %2023 = vadd.xlane.f32.xlu0 %v848
    %v2024 = vpop.xlane.xlu0 %2023
    %2025 = vadd.xlane.f32.xlu0 %v849
    %v2026 = vpop.xlane.xlu0 %2025
    %2027 = vadd.xlane.f32.xlu0 %v850
    %v2028 = vpop.xlane.xlu0 %2027
    %2029 = vadd.xlane.f32.xlu0 %v851
    %v2030 = vpop.xlane.xlu0 %2029
    %2031 = vadd.xlane.f32.xlu0 %v852
    %v2032 = vpop.xlane.xlu0 %2031
    %2033 = vadd.xlane.f32.xlu0 %v853
    %v2034 = vpop.xlane.xlu0 %2033
    %2035 = vadd.xlane.f32.xlu0 %v854
    %v2036 = vpop.xlane.xlu0 %2035
    %2037 = vadd.xlane.f32.xlu0 %v855
    %v2038 = vpop.xlane.xlu0 %2037
    %2039 = vadd.xlane.f32.xlu0 %v856
    %v2040 = vpop.xlane.xlu0 %2039
    %2041 = vadd.xlane.f32.xlu0 %v857
    %v2042 = vpop.xlane.xlu0 %2041
    %2043 = vadd.xlane.f32.xlu0 %v858
    %v2044 = vpop.xlane.xlu0 %2043
    %2045 = vadd.xlane.f32.xlu0 %v859
    %v2046 = vpop.xlane.xlu0 %2045
    %2047 = vadd.xlane.f32.xlu0 %v860
    %v2048 = vpop.xlane.xlu0 %2047
    %2049 = vadd.xlane.f32.xlu0 %v861
    %v2050 = vpop.xlane.xlu0 %2049
    %2051 = vadd.xlane.f32.xlu0 %v862
    %v2052 = vpop.xlane.xlu0 %2051
    %2053 = vadd.xlane.f32.xlu0 %v863
    %v2054 = vpop.xlane.xlu0 %2053
    %2055 = vadd.xlane.f32.xlu0 %v864
    %v2056 = vpop.xlane.xlu0 %2055
    %2057 = vadd.xlane.f32.xlu0 %v865
    %v2058 = vpop.xlane.xlu0 %2057
    %2059 = vadd.xlane.f32.xlu0 %v866
    %v2060 = vpop.xlane.xlu0 %2059
    %2061 = vadd.xlane.f32.xlu0 %v867
    %v2062 = vpop.xlane.xlu0 %2061
    %2063 = vadd.xlane.f32.xlu0 %v868
    %v2064 = vpop.xlane.xlu0 %2063
    %2065 = vadd.xlane.f32.xlu0 %v869
    %v2066 = vpop.xlane.xlu0 %2065
    %2067 = vadd.xlane.f32.xlu0 %v870
    %v2068 = vpop.xlane.xlu0 %2067
    %2069 = vadd.xlane.f32.xlu0 %v871
    %v2070 = vpop.xlane.xlu0 %2069
    %2071 = vadd.xlane.f32.xlu0 %v872
    %v2072 = vpop.xlane.xlu0 %2071
    %2073 = vadd.xlane.f32.xlu0 %v873
    %v2074 = vpop.xlane.xlu0 %2073
    %2075 = vadd.xlane.f32.xlu0 %v874
    %v2076 = vpop.xlane.xlu0 %2075
    %2077 = vadd.xlane.f32.xlu0 %v875
    %v2078 = vpop.xlane.xlu0 %2077
    %2079 = vadd.xlane.f32.xlu0 %v876
    %v2080 = vpop.xlane.xlu0 %2079
    %2081 = vadd.xlane.f32.xlu0 %v877
    %v2082 = vpop.xlane.xlu0 %2081
    %2083 = vadd.xlane.f32.xlu0 %v878
    %v2084 = vpop.xlane.xlu0 %2083
    %2085 = vadd.xlane.f32.xlu0 %v879
    %v2086 = vpop.xlane.xlu0 %2085
    %2087 = vadd.xlane.f32.xlu0 %v880
    %v2088 = vpop.xlane.xlu0 %2087
    %2089 = vadd.xlane.f32.xlu0 %v881
    %v2090 = vpop.xlane.xlu0 %2089
    %2091 = vadd.xlane.f32.xlu0 %v882
    %v2092 = vpop.xlane.xlu0 %2091
    %2093 = vadd.xlane.f32.xlu0 %v883
    %v2094 = vpop.xlane.xlu0 %2093
    %2095 = vadd.xlane.f32.xlu0 %v884
    %v2096 = vpop.xlane.xlu0 %2095
    %2097 = vadd.xlane.f32.xlu0 %v885
    %v2098 = vpop.xlane.xlu0 %2097
    %2099 = vadd.xlane.f32.xlu0 %v886
    %v2100 = vpop.xlane.xlu0 %2099
    %2101 = vadd.xlane.f32.xlu0 %v887
    %v2102 = vpop.xlane.xlu0 %2101
    %2103 = vadd.xlane.f32.xlu0 %v888
    %v2104 = vpop.xlane.xlu0 %2103
    %v2105 = vmax.f32 %v1978, 1.0
    %v2106 = vmax.f32 %v1980, 1.0
    %v2107 = vmax.f32 %v1982, 1.0
    %v2108 = vmax.f32 %v1984, 1.0
    %v2109 = vmax.f32 %v1986, 1.0
    %v2110 = vmax.f32 %v1988, 1.0
    %v2111 = vmax.f32 %v1990, 1.0
    %v2112 = vmax.f32 %v1992, 1.0
    %v2113 = vmax.f32 %v1994, 1.0
    %v2114 = vmax.f32 %v1996, 1.0
    %v2115 = vmax.f32 %v1998, 1.0
    %v2116 = vmax.f32 %v2000, 1.0
    %v2117 = vmax.f32 %v2002, 1.0
    %v2118 = vmax.f32 %v2004, 1.0
    %v2119 = vmax.f32 %v2006, 1.0
    %v2120 = vmax.f32 %v2008, 1.0
    %v2121 = vmax.f32 %v2010, 1.0
    %v2122 = vmax.f32 %v2012, 1.0
    %v2123 = vmax.f32 %v2014, 1.0
    %v2124 = vmax.f32 %v2016, 1.0
    %v2125 = vmax.f32 %v2018, 1.0
    %v2126 = vmax.f32 %v2020, 1.0
    %v2127 = vmax.f32 %v2022, 1.0
    %v2128 = vmax.f32 %v2024, 1.0
    %v2129 = vmax.f32 %v2026, 1.0
    %v2130 = vmax.f32 %v2028, 1.0
    %v2131 = vmax.f32 %v2030, 1.0
    %v2132 = vmax.f32 %v2032, 1.0
    %v2133 = vmax.f32 %v2034, 1.0
    %v2134 = vmax.f32 %v2036, 1.0
    %v2135 = vmax.f32 %v2038, 1.0
    %v2136 = vmax.f32 %v2040, 1.0
    %v2137 = vmax.f32 %v2042, 1.0
    %v2138 = vmax.f32 %v2044, 1.0
    %v2139 = vmax.f32 %v2046, 1.0
    %v2140 = vmax.f32 %v2048, 1.0
    %v2141 = vmax.f32 %v2050, 1.0
    %v2142 = vmax.f32 %v2052, 1.0
    %v2143 = vmax.f32 %v2054, 1.0
    %v2144 = vmax.f32 %v2056, 1.0
    %v2145 = vmax.f32 %v2058, 1.0
    %v2146 = vmax.f32 %v2060, 1.0
    %v2147 = vmax.f32 %v2062, 1.0
    %v2148 = vmax.f32 %v2064, 1.0
    %v2149 = vmax.f32 %v2066, 1.0
    %v2150 = vmax.f32 %v2068, 1.0
    %v2151 = vmax.f32 %v2070, 1.0
    %v2152 = vmax.f32 %v2072, 1.0
    %v2153 = vmax.f32 %v2074, 1.0
    %v2154 = vmax.f32 %v2076, 1.0
    %v2155 = vmax.f32 %v2078, 1.0
    %v2156 = vmax.f32 %v2080, 1.0
    %v2157 = vmax.f32 %v2082, 1.0
    %v2158 = vmax.f32 %v2084, 1.0
    %v2159 = vmax.f32 %v2086, 1.0
    %v2160 = vmax.f32 %v2088, 1.0
    %v2161 = vmax.f32 %v2090, 1.0
    %v2162 = vmax.f32 %v2092, 1.0
    %v2163 = vmax.f32 %v2094, 1.0
    %v2164 = vmax.f32 %v2096, 1.0
    %v2165 = vmax.f32 %v2098, 1.0
    %v2166 = vmax.f32 %v2100, 1.0
    %v2167 = vmax.f32 %v2102, 1.0
    %v2168 = vmax.f32 %v2104, 1.0
    %v2169 = vrcp.pop %v2105
    %v2170 = vrcp.pop %v2106
    %v2171 = vrcp.pop %v2107
    %v2172 = vrcp.pop %v2108
    %v2173 = vrcp.pop %v2109
    %v2174 = vrcp.pop %v2110
    %v2175 = vrcp.pop %v2111
    %v2176 = vrcp.pop %v2112
    %v2177 = vrcp.pop %v2113
    %v2178 = vrcp.pop %v2114
    %v2179 = vrcp.pop %v2115
    %v2180 = vrcp.pop %v2116
    %v2181 = vrcp.pop %v2117
    %v2182 = vrcp.pop %v2118
    %v2183 = vrcp.pop %v2119
    %v2184 = vrcp.pop %v2120
    %v2185 = vrcp.pop %v2121
    %v2186 = vrcp.pop %v2122
    %v2187 = vrcp.pop %v2123
    %v2188 = vrcp.pop %v2124
    %v2189 = vrcp.pop %v2125
    %v2190 = vrcp.pop %v2126
    %v2191 = vrcp.pop %v2127
    %v2192 = vrcp.pop %v2128
    %v2193 = vrcp.pop %v2129
    %v2194 = vrcp.pop %v2130
    %v2195 = vrcp.pop %v2131
    %v2196 = vrcp.pop %v2132
    %v2197 = vrcp.pop %v2133
    %v2198 = vrcp.pop %v2134
    %v2199 = vrcp.pop %v2135
    %v2200 = vrcp.pop %v2136
    %v2201 = vrcp.pop %v2137
    %v2202 = vrcp.pop %v2138
    %v2203 = vrcp.pop %v2139
    %v2204 = vrcp.pop %v2140
    %v2205 = vrcp.pop %v2141
    %v2206 = vrcp.pop %v2142
    %v2207 = vrcp.pop %v2143
    %v2208 = vrcp.pop %v2144
    %v2209 = vrcp.pop %v2145
    %v2210 = vrcp.pop %v2146
    %v2211 = vrcp.pop %v2147
    %v2212 = vrcp.pop %v2148
    %v2213 = vrcp.pop %v2149
    %v2214 = vrcp.pop %v2150
    %v2215 = vrcp.pop %v2151
    %v2216 = vrcp.pop %v2152
    %v2217 = vrcp.pop %v2153
    %v2218 = vrcp.pop %v2154
    %v2219 = vrcp.pop %v2155
    %v2220 = vrcp.pop %v2156
    %v2221 = vrcp.pop %v2157
    %v2222 = vrcp.pop %v2158
    %v2223 = vrcp.pop %v2159
    %v2224 = vrcp.pop %v2160
    %v2225 = vrcp.pop %v2161
    %v2226 = vrcp.pop %v2162
    %v2227 = vrcp.pop %v2163
    %v2228 = vrcp.pop %v2164
    %v2229 = vrcp.pop %v2165
    %v2230 = vrcp.pop %v2166
    %v2231 = vrcp.pop %v2167
    %v2232 = vrcp.pop %v2168
    %2233 = vadd.xlane.f32.xlu0 %v1913
    %v2234 = vpop.xlane.xlu0 %2233
    %2235 = vadd.xlane.f32.xlu0 %v1914
    %v2236 = vpop.xlane.xlu0 %2235
    %2237 = vadd.xlane.f32.xlu0 %v1915
    %v2238 = vpop.xlane.xlu0 %2237
    %2239 = vadd.xlane.f32.xlu0 %v1916
    %v2240 = vpop.xlane.xlu0 %2239
    %2241 = vadd.xlane.f32.xlu0 %v1917
    %v2242 = vpop.xlane.xlu0 %2241
    %2243 = vadd.xlane.f32.xlu0 %v1918
    %v2244 = vpop.xlane.xlu0 %2243
    %2245 = vadd.xlane.f32.xlu0 %v1919
    %v2246 = vpop.xlane.xlu0 %2245
    %2247 = vadd.xlane.f32.xlu0 %v1920
    %v2248 = vpop.xlane.xlu0 %2247
    %2249 = vadd.xlane.f32.xlu0 %v1921
    %v2250 = vpop.xlane.xlu0 %2249
    %2251 = vadd.xlane.f32.xlu0 %v1922
    %v2252 = vpop.xlane.xlu0 %2251
    %2253 = vadd.xlane.f32.xlu0 %v1923
    %v2254 = vpop.xlane.xlu0 %2253
    %2255 = vadd.xlane.f32.xlu0 %v1924
    %v2256 = vpop.xlane.xlu0 %2255
    %2257 = vadd.xlane.f32.xlu0 %v1925
    %v2258 = vpop.xlane.xlu0 %2257
    %2259 = vadd.xlane.f32.xlu0 %v1926
    %v2260 = vpop.xlane.xlu0 %2259
    %2261 = vadd.xlane.f32.xlu0 %v1927
    %v2262 = vpop.xlane.xlu0 %2261
    %2263 = vadd.xlane.f32.xlu0 %v1928
    %v2264 = vpop.xlane.xlu0 %2263
    %2265 = vadd.xlane.f32.xlu0 %v1929
    %v2266 = vpop.xlane.xlu0 %2265
    %2267 = vadd.xlane.f32.xlu0 %v1930
    %v2268 = vpop.xlane.xlu0 %2267
    %2269 = vadd.xlane.f32.xlu0 %v1931
    %v2270 = vpop.xlane.xlu0 %2269
    %2271 = vadd.xlane.f32.xlu0 %v1932
    %v2272 = vpop.xlane.xlu0 %2271
    %2273 = vadd.xlane.f32.xlu0 %v1933
    %v2274 = vpop.xlane.xlu0 %2273
    %2275 = vadd.xlane.f32.xlu0 %v1934
    %v2276 = vpop.xlane.xlu0 %2275
    %2277 = vadd.xlane.f32.xlu0 %v1935
    %v2278 = vpop.xlane.xlu0 %2277
    %2279 = vadd.xlane.f32.xlu0 %v1936
    %v2280 = vpop.xlane.xlu0 %2279
    %2281 = vadd.xlane.f32.xlu0 %v1937
    %v2282 = vpop.xlane.xlu0 %2281
    %2283 = vadd.xlane.f32.xlu0 %v1938
    %v2284 = vpop.xlane.xlu0 %2283
    %2285 = vadd.xlane.f32.xlu0 %v1939
    %v2286 = vpop.xlane.xlu0 %2285
    %2287 = vadd.xlane.f32.xlu0 %v1940
    %v2288 = vpop.xlane.xlu0 %2287
    %2289 = vadd.xlane.f32.xlu0 %v1941
    %v2290 = vpop.xlane.xlu0 %2289
    %2291 = vadd.xlane.f32.xlu0 %v1942
    %v2292 = vpop.xlane.xlu0 %2291
    %2293 = vadd.xlane.f32.xlu0 %v1943
    %v2294 = vpop.xlane.xlu0 %2293
    %2295 = vadd.xlane.f32.xlu0 %v1944
    %v2296 = vpop.xlane.xlu0 %2295
    %2297 = vadd.xlane.f32.xlu0 %v1945
    %v2298 = vpop.xlane.xlu0 %2297
    %2299 = vadd.xlane.f32.xlu0 %v1946
    %v2300 = vpop.xlane.xlu0 %2299
    %2301 = vadd.xlane.f32.xlu0 %v1947
    %v2302 = vpop.xlane.xlu0 %2301
    %2303 = vadd.xlane.f32.xlu0 %v1948
    %v2304 = vpop.xlane.xlu0 %2303
    %2305 = vadd.xlane.f32.xlu0 %v1949
    %v2306 = vpop.xlane.xlu0 %2305
    %2307 = vadd.xlane.f32.xlu0 %v1950
    %v2308 = vpop.xlane.xlu0 %2307
    %2309 = vadd.xlane.f32.xlu0 %v1951
    %v2310 = vpop.xlane.xlu0 %2309
    %2311 = vadd.xlane.f32.xlu0 %v1952
    %v2312 = vpop.xlane.xlu0 %2311
    %2313 = vadd.xlane.f32.xlu0 %v1953
    %v2314 = vpop.xlane.xlu0 %2313
    %2315 = vadd.xlane.f32.xlu0 %v1954
    %v2316 = vpop.xlane.xlu0 %2315
    %2317 = vadd.xlane.f32.xlu0 %v1955
    %v2318 = vpop.xlane.xlu0 %2317
    %2319 = vadd.xlane.f32.xlu0 %v1956
    %v2320 = vpop.xlane.xlu0 %2319
    %2321 = vadd.xlane.f32.xlu0 %v1957
    %v2322 = vpop.xlane.xlu0 %2321
    %2323 = vadd.xlane.f32.xlu0 %v1958
    %v2324 = vpop.xlane.xlu0 %2323
    %2325 = vadd.xlane.f32.xlu0 %v1959
    %v2326 = vpop.xlane.xlu0 %2325
    %2327 = vadd.xlane.f32.xlu0 %v1960
    %v2328 = vpop.xlane.xlu0 %2327
    %2329 = vadd.xlane.f32.xlu0 %v1961
    %v2330 = vpop.xlane.xlu0 %2329
    %2331 = vadd.xlane.f32.xlu0 %v1962
    %v2332 = vpop.xlane.xlu0 %2331
    %2333 = vadd.xlane.f32.xlu0 %v1963
    %v2334 = vpop.xlane.xlu0 %2333
    %2335 = vadd.xlane.f32.xlu0 %v1964
    %v2336 = vpop.xlane.xlu0 %2335
    %2337 = vadd.xlane.f32.xlu0 %v1965
    %v2338 = vpop.xlane.xlu0 %2337
    %2339 = vadd.xlane.f32.xlu0 %v1966
    %v2340 = vpop.xlane.xlu0 %2339
    %2341 = vadd.xlane.f32.xlu0 %v1967
    %v2342 = vpop.xlane.xlu0 %2341
    %2343 = vadd.xlane.f32.xlu0 %v1968
    %v2344 = vpop.xlane.xlu0 %2343
    %2345 = vadd.xlane.f32.xlu0 %v1969
    %v2346 = vpop.xlane.xlu0 %2345
    %2347 = vadd.xlane.f32.xlu0 %v1970
    %v2348 = vpop.xlane.xlu0 %2347
    %2349 = vadd.xlane.f32.xlu0 %v1971
    %v2350 = vpop.xlane.xlu0 %2349
    %2351 = vadd.xlane.f32.xlu0 %v1972
    %v2352 = vpop.xlane.xlu0 %2351
    %2353 = vadd.xlane.f32.xlu0 %v1973
    %v2354 = vpop.xlane.xlu0 %2353
    %2355 = vadd.xlane.f32.xlu0 %v1974
    %v2356 = vpop.xlane.xlu0 %2355
    %2357 = vadd.xlane.f32.xlu0 %v1975
    %v2358 = vpop.xlane.xlu0 %2357
    %2359 = vadd.xlane.f32.xlu0 %v1976
    %v2360 = vpop.xlane.xlu0 %2359
    %v2361 = vmul.f32 %v2234, %v2169
    %v2362 = vmul.f32 %v2236, %v2170
    %v2363 = vmul.f32 %v2238, %v2171
    %v2364 = vmul.f32 %v2240, %v2172
    %v2365 = vmul.f32 %v2242, %v2173
    %v2366 = vmul.f32 %v2244, %v2174
    %v2367 = vmul.f32 %v2246, %v2175
    %v2368 = vmul.f32 %v2248, %v2176
    %v2369 = vmul.f32 %v2250, %v2177
    %v2370 = vmul.f32 %v2252, %v2178
    %v2371 = vmul.f32 %v2254, %v2179
    %v2372 = vmul.f32 %v2256, %v2180
    %v2373 = vmul.f32 %v2258, %v2181
    %v2374 = vmul.f32 %v2260, %v2182
    %v2375 = vmul.f32 %v2262, %v2183
    %v2376 = vmul.f32 %v2264, %v2184
    %v2377 = vmul.f32 %v2266, %v2185
    %v2378 = vmul.f32 %v2268, %v2186
    %v2379 = vmul.f32 %v2270, %v2187
    %v2380 = vmul.f32 %v2272, %v2188
    %v2381 = vmul.f32 %v2274, %v2189
    %v2382 = vmul.f32 %v2276, %v2190
    %v2383 = vmul.f32 %v2278, %v2191
    %v2384 = vmul.f32 %v2280, %v2192
    %v2385 = vmul.f32 %v2282, %v2193
    %v2386 = vmul.f32 %v2284, %v2194
    %v2387 = vmul.f32 %v2286, %v2195
    %v2388 = vmul.f32 %v2288, %v2196
    %v2389 = vmul.f32 %v2290, %v2197
    %v2390 = vmul.f32 %v2292, %v2198
    %v2391 = vmul.f32 %v2294, %v2199
    %v2392 = vmul.f32 %v2296, %v2200
    %v2393 = vmul.f32 %v2298, %v2201
    %v2394 = vmul.f32 %v2300, %v2202
    %v2395 = vmul.f32 %v2302, %v2203
    %v2396 = vmul.f32 %v2304, %v2204
    %v2397 = vmul.f32 %v2306, %v2205
    %v2398 = vmul.f32 %v2308, %v2206
    %v2399 = vmul.f32 %v2310, %v2207
    %v2400 = vmul.f32 %v2312, %v2208
    %v2401 = vmul.f32 %v2314, %v2209
    %v2402 = vmul.f32 %v2316, %v2210
    %v2403 = vmul.f32 %v2318, %v2211
    %v2404 = vmul.f32 %v2320, %v2212
    %v2405 = vmul.f32 %v2322, %v2213
    %v2406 = vmul.f32 %v2324, %v2214
    %v2407 = vmul.f32 %v2326, %v2215
    %v2408 = vmul.f32 %v2328, %v2216
    %v2409 = vmul.f32 %v2330, %v2217
    %v2410 = vmul.f32 %v2332, %v2218
    %v2411 = vmul.f32 %v2334, %v2219
    %v2412 = vmul.f32 %v2336, %v2220
    %v2413 = vmul.f32 %v2338, %v2221
    %v2414 = vmul.f32 %v2340, %v2222
    %v2415 = vmul.f32 %v2342, %v2223
    %v2416 = vmul.f32 %v2344, %v2224
    %v2417 = vmul.f32 %v2346, %v2225
    %v2418 = vmul.f32 %v2348, %v2226
    %v2419 = vmul.f32 %v2350, %v2227
    %v2420 = vmul.f32 %v2352, %v2228
    %v2421 = vmul.f32 %v2354, %v2229
    %v2422 = vmul.f32 %v2356, %v2230
    %v2423 = vmul.f32 %v2358, %v2231
    %v2424 = vmul.f32 %v2360, %v2232
    %v2425 = vsub.f32 0.0, %v2361
    %v2426 = vsub.f32 0.0, %v2362
    %v2427 = vsub.f32 0.0, %v2363
    %v2428 = vsub.f32 0.0, %v2364
    %v2429 = vsub.f32 0.0, %v2365
    %v2430 = vsub.f32 0.0, %v2366
    %v2431 = vsub.f32 0.0, %v2367
    %v2432 = vsub.f32 0.0, %v2368
    %v2433 = vsub.f32 0.0, %v2369
    %v2434 = vsub.f32 0.0, %v2370
    %v2435 = vsub.f32 0.0, %v2371
    %v2436 = vsub.f32 0.0, %v2372
    %v2437 = vsub.f32 0.0, %v2373
    %v2438 = vsub.f32 0.0, %v2374
    %v2439 = vsub.f32 0.0, %v2375
    %v2440 = vsub.f32 0.0, %v2376
    %v2441 = vsub.f32 0.0, %v2377
    %v2442 = vsub.f32 0.0, %v2378
    %v2443 = vsub.f32 0.0, %v2379
    %v2444 = vsub.f32 0.0, %v2380
    %v2445 = vsub.f32 0.0, %v2381
    %v2446 = vsub.f32 0.0, %v2382
    %v2447 = vsub.f32 0.0, %v2383
    %v2448 = vsub.f32 0.0, %v2384
    %v2449 = vsub.f32 0.0, %v2385
    %v2450 = vsub.f32 0.0, %v2386
    %v2451 = vsub.f32 0.0, %v2387
    %v2452 = vsub.f32 0.0, %v2388
    %v2453 = vsub.f32 0.0, %v2389
    %v2454 = vsub.f32 0.0, %v2390
    %v2455 = vsub.f32 0.0, %v2391
    %v2456 = vsub.f32 0.0, %v2392
    %v2457 = vsub.f32 0.0, %v2393
    %v2458 = vsub.f32 0.0, %v2394
    %v2459 = vsub.f32 0.0, %v2395
    %v2460 = vsub.f32 0.0, %v2396
    %v2461 = vsub.f32 0.0, %v2397
    %v2462 = vsub.f32 0.0, %v2398
    %v2463 = vsub.f32 0.0, %v2399
    %v2464 = vsub.f32 0.0, %v2400
    %v2465 = vsub.f32 0.0, %v2401
    %v2466 = vsub.f32 0.0, %v2402
    %v2467 = vsub.f32 0.0, %v2403
    %v2468 = vsub.f32 0.0, %v2404
    %v2469 = vsub.f32 0.0, %v2405
    %v2470 = vsub.f32 0.0, %v2406
    %v2471 = vsub.f32 0.0, %v2407
    %v2472 = vsub.f32 0.0, %v2408
    %v2473 = vsub.f32 0.0, %v2409
    %v2474 = vsub.f32 0.0, %v2410
    %v2475 = vsub.f32 0.0, %v2411
    %v2476 = vsub.f32 0.0, %v2412
    %v2477 = vsub.f32 0.0, %v2413
    %v2478 = vsub.f32 0.0, %v2414
    %v2479 = vsub.f32 0.0, %v2415
    %v2480 = vsub.f32 0.0, %v2416
    %v2481 = vsub.f32 0.0, %v2417
    %v2482 = vsub.f32 0.0, %v2418
    %v2483 = vsub.f32 0.0, %v2419
    %v2484 = vsub.f32 0.0, %v2420
    %v2485 = vsub.f32 0.0, %v2421
    %v2486 = vsub.f32 0.0, %v2422
    %v2487 = vsub.f32 0.0, %v2423
    %v2488 = vsub.f32 0.0, %v2424
    %vm2489 = vcmp.ge.s32.totalorder %v98, 0
    %vm2490 = vcmp.ge.s32.totalorder %v99, 0
    %vm2491 = vcmp.ge.s32.totalorder %v100, 0
    %vm2492 = vcmp.ge.s32.totalorder %v101, 0
    %vm2493 = vcmp.ge.s32.totalorder %v102, 0
    %vm2494 = vcmp.ge.s32.totalorder %v103, 0
    %vm2495 = vcmp.ge.s32.totalorder %v104, 0
    %vm2496 = vcmp.ge.s32.totalorder %v105, 0
    %vm2497 = vcmp.ge.s32.totalorder %v106, 0
    %vm2498 = vcmp.ge.s32.totalorder %v107, 0
    %vm2499 = vcmp.ge.s32.totalorder %v108, 0
    %vm2500 = vcmp.ge.s32.totalorder %v109, 0
    %vm2501 = vcmp.ge.s32.totalorder %v110, 0
    %vm2502 = vcmp.ge.s32.totalorder %v111, 0
    %vm2503 = vcmp.ge.s32.totalorder %v112, 0
    %vm2504 = vcmp.ge.s32.totalorder %v113, 0
    %vm2505 = vcmp.ge.s32.totalorder %v114, 0
    %vm2506 = vcmp.ge.s32.totalorder %v115, 0
    %vm2507 = vcmp.ge.s32.totalorder %v116, 0
    %vm2508 = vcmp.ge.s32.totalorder %v117, 0
    %vm2509 = vcmp.ge.s32.totalorder %v118, 0
    %vm2510 = vcmp.ge.s32.totalorder %v119, 0
    %vm2511 = vcmp.ge.s32.totalorder %v120, 0
    %vm2512 = vcmp.ge.s32.totalorder %v121, 0
    %vm2513 = vcmp.ge.s32.totalorder %v122, 0
    %vm2514 = vcmp.ge.s32.totalorder %v123, 0
    %vm2515 = vcmp.ge.s32.totalorder %v124, 0
    %vm2516 = vcmp.ge.s32.totalorder %v125, 0
    %vm2517 = vcmp.ge.s32.totalorder %v126, 0
    %vm2518 = vcmp.ge.s32.totalorder %v127, 0
    %vm2519 = vcmp.ge.s32.totalorder %v128, 0
    %vm2520 = vcmp.ge.s32.totalorder %v129, 0
    %vm2521 = vcmp.ge.s32.totalorder %v130, 0
    %vm2522 = vcmp.ge.s32.totalorder %v131, 0
    %vm2523 = vcmp.ge.s32.totalorder %v132, 0
    %vm2524 = vcmp.ge.s32.totalorder %v133, 0
    %vm2525 = vcmp.ge.s32.totalorder %v134, 0
    %vm2526 = vcmp.ge.s32.totalorder %v135, 0
    %vm2527 = vcmp.ge.s32.totalorder %v136, 0
    %vm2528 = vcmp.ge.s32.totalorder %v137, 0
    %vm2529 = vcmp.ge.s32.totalorder %v138, 0
    %vm2530 = vcmp.ge.s32.totalorder %v139, 0
    %vm2531 = vcmp.ge.s32.totalorder %v140, 0
    %vm2532 = vcmp.ge.s32.totalorder %v141, 0
    %vm2533 = vcmp.ge.s32.totalorder %v142, 0
    %vm2534 = vcmp.ge.s32.totalorder %v143, 0
    %vm2535 = vcmp.ge.s32.totalorder %v144, 0
    %vm2536 = vcmp.ge.s32.totalorder %v145, 0
    %vm2537 = vcmp.ge.s32.totalorder %v146, 0
    %vm2538 = vcmp.ge.s32.totalorder %v147, 0
    %vm2539 = vcmp.ge.s32.totalorder %v148, 0
    %vm2540 = vcmp.ge.s32.totalorder %v149, 0
    %vm2541 = vcmp.ge.s32.totalorder %v150, 0
    %vm2542 = vcmp.ge.s32.totalorder %v151, 0
    %vm2543 = vcmp.ge.s32.totalorder %v152, 0
    %vm2544 = vcmp.ge.s32.totalorder %v153, 0
    %vm2545 = vcmp.ge.s32.totalorder %v154, 0
    %vm2546 = vcmp.ge.s32.totalorder %v155, 0
    %vm2547 = vcmp.ge.s32.totalorder %v156, 0
    %vm2548 = vcmp.ge.s32.totalorder %v157, 0
    %vm2549 = vcmp.ge.s32.totalorder %v158, 0
    %vm2550 = vcmp.ge.s32.totalorder %v159, 0
    %vm2551 = vcmp.ge.s32.totalorder %v160, 0
    %vm2552 = vcmp.ge.s32.totalorder %v161, 0
    %vm2553 = vcmp.gt.f32.partialorder %v1978, 0.0
    %vm2554 = vcmp.gt.f32.partialorder %v1980, 0.0
    %vm2555 = vcmp.gt.f32.partialorder %v1982, 0.0
    %vm2556 = vcmp.gt.f32.partialorder %v1984, 0.0
    %vm2557 = vcmp.gt.f32.partialorder %v1986, 0.0
    %vm2558 = vcmp.gt.f32.partialorder %v1988, 0.0
    %vm2559 = vcmp.gt.f32.partialorder %v1990, 0.0
    %vm2560 = vcmp.gt.f32.partialorder %v1992, 0.0
    %vm2561 = vcmp.gt.f32.partialorder %v1994, 0.0
    %vm2562 = vcmp.gt.f32.partialorder %v1996, 0.0
    %vm2563 = vcmp.gt.f32.partialorder %v1998, 0.0
    %vm2564 = vcmp.gt.f32.partialorder %v2000, 0.0
    %vm2565 = vcmp.gt.f32.partialorder %v2002, 0.0
    %vm2566 = vcmp.gt.f32.partialorder %v2004, 0.0
    %vm2567 = vcmp.gt.f32.partialorder %v2006, 0.0
    %vm2568 = vcmp.gt.f32.partialorder %v2008, 0.0
    %vm2569 = vcmp.gt.f32.partialorder %v2010, 0.0
    %vm2570 = vcmp.gt.f32.partialorder %v2012, 0.0
    %vm2571 = vcmp.gt.f32.partialorder %v2014, 0.0
    %vm2572 = vcmp.gt.f32.partialorder %v2016, 0.0
    %vm2573 = vcmp.gt.f32.partialorder %v2018, 0.0
    %vm2574 = vcmp.gt.f32.partialorder %v2020, 0.0
    %vm2575 = vcmp.gt.f32.partialorder %v2022, 0.0
    %vm2576 = vcmp.gt.f32.partialorder %v2024, 0.0
    %vm2577 = vcmp.gt.f32.partialorder %v2026, 0.0
    %vm2578 = vcmp.gt.f32.partialorder %v2028, 0.0
    %vm2579 = vcmp.gt.f32.partialorder %v2030, 0.0
    %vm2580 = vcmp.gt.f32.partialorder %v2032, 0.0
    %vm2581 = vcmp.gt.f32.partialorder %v2034, 0.0
    %vm2582 = vcmp.gt.f32.partialorder %v2036, 0.0
    %vm2583 = vcmp.gt.f32.partialorder %v2038, 0.0
    %vm2584 = vcmp.gt.f32.partialorder %v2040, 0.0
    %vm2585 = vcmp.gt.f32.partialorder %v2042, 0.0
    %vm2586 = vcmp.gt.f32.partialorder %v2044, 0.0
    %vm2587 = vcmp.gt.f32.partialorder %v2046, 0.0
    %vm2588 = vcmp.gt.f32.partialorder %v2048, 0.0
    %vm2589 = vcmp.gt.f32.partialorder %v2050, 0.0
    %vm2590 = vcmp.gt.f32.partialorder %v2052, 0.0
    %vm2591 = vcmp.gt.f32.partialorder %v2054, 0.0
    %vm2592 = vcmp.gt.f32.partialorder %v2056, 0.0
    %vm2593 = vcmp.gt.f32.partialorder %v2058, 0.0
    %vm2594 = vcmp.gt.f32.partialorder %v2060, 0.0
    %vm2595 = vcmp.gt.f32.partialorder %v2062, 0.0
    %vm2596 = vcmp.gt.f32.partialorder %v2064, 0.0
    %vm2597 = vcmp.gt.f32.partialorder %v2066, 0.0
    %vm2598 = vcmp.gt.f32.partialorder %v2068, 0.0
    %vm2599 = vcmp.gt.f32.partialorder %v2070, 0.0
    %vm2600 = vcmp.gt.f32.partialorder %v2072, 0.0
    %vm2601 = vcmp.gt.f32.partialorder %v2074, 0.0
    %vm2602 = vcmp.gt.f32.partialorder %v2076, 0.0
    %vm2603 = vcmp.gt.f32.partialorder %v2078, 0.0
    %vm2604 = vcmp.gt.f32.partialorder %v2080, 0.0
    %vm2605 = vcmp.gt.f32.partialorder %v2082, 0.0
    %vm2606 = vcmp.gt.f32.partialorder %v2084, 0.0
    %vm2607 = vcmp.gt.f32.partialorder %v2086, 0.0
    %vm2608 = vcmp.gt.f32.partialorder %v2088, 0.0
    %vm2609 = vcmp.gt.f32.partialorder %v2090, 0.0
    %vm2610 = vcmp.gt.f32.partialorder %v2092, 0.0
    %vm2611 = vcmp.gt.f32.partialorder %v2094, 0.0
    %vm2612 = vcmp.gt.f32.partialorder %v2096, 0.0
    %vm2613 = vcmp.gt.f32.partialorder %v2098, 0.0
    %vm2614 = vcmp.gt.f32.partialorder %v2100, 0.0
    %vm2615 = vcmp.gt.f32.partialorder %v2102, 0.0
    %vm2616 = vcmp.gt.f32.partialorder %v2104, 0.0
    %vm2617 = vmand %vm2489, %vm2553
    %vm2618 = vmand %vm2490, %vm2554
    %vm2619 = vmand %vm2491, %vm2555
    %vm2620 = vmand %vm2492, %vm2556
    %vm2621 = vmand %vm2493, %vm2557
    %vm2622 = vmand %vm2494, %vm2558
    %vm2623 = vmand %vm2495, %vm2559
    %vm2624 = vmand %vm2496, %vm2560
    %vm2625 = vmand %vm2497, %vm2561
    %vm2626 = vmand %vm2498, %vm2562
    %vm2627 = vmand %vm2499, %vm2563
    %vm2628 = vmand %vm2500, %vm2564
    %vm2629 = vmand %vm2501, %vm2565
    %vm2630 = vmand %vm2502, %vm2566
    %vm2631 = vmand %vm2503, %vm2567
    %vm2632 = vmand %vm2504, %vm2568
    %vm2633 = vmand %vm2505, %vm2569
    %vm2634 = vmand %vm2506, %vm2570
    %vm2635 = vmand %vm2507, %vm2571
    %vm2636 = vmand %vm2508, %vm2572
    %vm2637 = vmand %vm2509, %vm2573
    %vm2638 = vmand %vm2510, %vm2574
    %vm2639 = vmand %vm2511, %vm2575
    %vm2640 = vmand %vm2512, %vm2576
    %vm2641 = vmand %vm2513, %vm2577
    %vm2642 = vmand %vm2514, %vm2578
    %vm2643 = vmand %vm2515, %vm2579
    %vm2644 = vmand %vm2516, %vm2580
    %vm2645 = vmand %vm2517, %vm2581
    %vm2646 = vmand %vm2518, %vm2582
    %vm2647 = vmand %vm2519, %vm2583
    %vm2648 = vmand %vm2520, %vm2584
    %vm2649 = vmand %vm2521, %vm2585
    %vm2650 = vmand %vm2522, %vm2586
    %vm2651 = vmand %vm2523, %vm2587
    %vm2652 = vmand %vm2524, %vm2588
    %vm2653 = vmand %vm2525, %vm2589
    %vm2654 = vmand %vm2526, %vm2590
    %vm2655 = vmand %vm2527, %vm2591
    %vm2656 = vmand %vm2528, %vm2592
    %vm2657 = vmand %vm2529, %vm2593
    %vm2658 = vmand %vm2530, %vm2594
    %vm2659 = vmand %vm2531, %vm2595
    %vm2660 = vmand %vm2532, %vm2596
    %vm2661 = vmand %vm2533, %vm2597
    %vm2662 = vmand %vm2534, %vm2598
    %vm2663 = vmand %vm2535, %vm2599
    %vm2664 = vmand %vm2536, %vm2600
    %vm2665 = vmand %vm2537, %vm2601
    %vm2666 = vmand %vm2538, %vm2602
    %vm2667 = vmand %vm2539, %vm2603
    %vm2668 = vmand %vm2540, %vm2604
    %vm2669 = vmand %vm2541, %vm2605
    %vm2670 = vmand %vm2542, %vm2606
    %vm2671 = vmand %vm2543, %vm2607
    %vm2672 = vmand %vm2544, %vm2608
    %vm2673 = vmand %vm2545, %vm2609
    %vm2674 = vmand %vm2546, %vm2610
    %vm2675 = vmand %vm2547, %vm2611
    %vm2676 = vmand %vm2548, %vm2612
    %vm2677 = vmand %vm2549, %vm2613
    %vm2678 = vmand %vm2550, %vm2614
    %vm2679 = vmand %vm2551, %vm2615
    %vm2680 = vmand %vm2552, %vm2616
    %v2681 = vsel %vm2617, %v2425, 0.0
    %v2682 = vsel %vm2618, %v2426, 0.0
    %v2683 = vsel %vm2619, %v2427, 0.0
    %v2684 = vsel %vm2620, %v2428, 0.0
    %v2685 = vsel %vm2621, %v2429, 0.0
    %v2686 = vsel %vm2622, %v2430, 0.0
    %v2687 = vsel %vm2623, %v2431, 0.0
    %v2688 = vsel %vm2624, %v2432, 0.0
    %v2689 = vsel %vm2625, %v2433, 0.0
    %v2690 = vsel %vm2626, %v2434, 0.0
    %v2691 = vsel %vm2627, %v2435, 0.0
    %v2692 = vsel %vm2628, %v2436, 0.0
    %v2693 = vsel %vm2629, %v2437, 0.0
    %v2694 = vsel %vm2630, %v2438, 0.0
    %v2695 = vsel %vm2631, %v2439, 0.0
    %v2696 = vsel %vm2632, %v2440, 0.0
    %v2697 = vsel %vm2633, %v2441, 0.0
    %v2698 = vsel %vm2634, %v2442, 0.0
    %v2699 = vsel %vm2635, %v2443, 0.0
    %v2700 = vsel %vm2636, %v2444, 0.0
    %v2701 = vsel %vm2637, %v2445, 0.0
    %v2702 = vsel %vm2638, %v2446, 0.0
    %v2703 = vsel %vm2639, %v2447, 0.0
    %v2704 = vsel %vm2640, %v2448, 0.0
    %v2705 = vsel %vm2641, %v2449, 0.0
    %v2706 = vsel %vm2642, %v2450, 0.0
    %v2707 = vsel %vm2643, %v2451, 0.0
    %v2708 = vsel %vm2644, %v2452, 0.0
    %v2709 = vsel %vm2645, %v2453, 0.0
    %v2710 = vsel %vm2646, %v2454, 0.0
    %v2711 = vsel %vm2647, %v2455, 0.0
    %v2712 = vsel %vm2648, %v2456, 0.0
    %v2713 = vsel %vm2649, %v2457, 0.0
    %v2714 = vsel %vm2650, %v2458, 0.0
    %v2715 = vsel %vm2651, %v2459, 0.0
    %v2716 = vsel %vm2652, %v2460, 0.0
    %v2717 = vsel %vm2653, %v2461, 0.0
    %v2718 = vsel %vm2654, %v2462, 0.0
    %v2719 = vsel %vm2655, %v2463, 0.0
    %v2720 = vsel %vm2656, %v2464, 0.0
    %v2721 = vsel %vm2657, %v2465, 0.0
    %v2722 = vsel %vm2658, %v2466, 0.0
    %v2723 = vsel %vm2659, %v2467, 0.0
    %v2724 = vsel %vm2660, %v2468, 0.0
    %v2725 = vsel %vm2661, %v2469, 0.0
    %v2726 = vsel %vm2662, %v2470, 0.0
    %v2727 = vsel %vm2663, %v2471, 0.0
    %v2728 = vsel %vm2664, %v2472, 0.0
    %v2729 = vsel %vm2665, %v2473, 0.0
    %v2730 = vsel %vm2666, %v2474, 0.0
    %v2731 = vsel %vm2667, %v2475, 0.0
    %v2732 = vsel %vm2668, %v2476, 0.0
    %v2733 = vsel %vm2669, %v2477, 0.0
    %v2734 = vsel %vm2670, %v2478, 0.0
    %v2735 = vsel %vm2671, %v2479, 0.0
    %v2736 = vsel %vm2672, %v2480, 0.0
    %v2737 = vsel %vm2673, %v2481, 0.0
    %v2738 = vsel %vm2674, %v2482, 0.0
    %v2739 = vsel %vm2675, %v2483, 0.0
    %v2740 = vsel %vm2676, %v2484, 0.0
    %v2741 = vsel %vm2677, %v2485, 0.0
    %v2742 = vsel %vm2678, %v2486, 0.0
    %v2743 = vsel %vm2679, %v2487, 0.0
    %v2744 = vsel %vm2680, %v2488, 0.0
    %vm2745 = vcmask 7168
    %v2746 = vsel %vm2745, %v2681, 0.0
    %v2747 = vsel %vm2745, %v2682, 0.0
    %v2748 = vadd.f32 %v2746, %v2747
    %v2749 = vsel %vm2745, %v2683, 0.0
    %v2750 = vadd.f32 %v2748, %v2749
    %v2751 = vsel %vm2745, %v2684, 0.0
    %v2752 = vadd.f32 %v2750, %v2751
    %v2753 = vsel %vm2745, %v2685, 0.0
    %v2754 = vadd.f32 %v2752, %v2753
    %v2755 = vsel %vm2745, %v2686, 0.0
    %v2756 = vadd.f32 %v2754, %v2755
    %v2757 = vsel %vm2745, %v2687, 0.0
    %v2758 = vadd.f32 %v2756, %v2757
    %v2759 = vsel %vm2745, %v2688, 0.0
    %v2760 = vadd.f32 %v2758, %v2759
    %v2761 = vsel %vm2745, %v2689, 0.0
    %v2762 = vadd.f32 %v2760, %v2761
    %v2763 = vsel %vm2745, %v2690, 0.0
    %v2764 = vadd.f32 %v2762, %v2763
    %v2765 = vsel %vm2745, %v2691, 0.0
    %v2766 = vadd.f32 %v2764, %v2765
    %v2767 = vsel %vm2745, %v2692, 0.0
    %v2768 = vadd.f32 %v2766, %v2767
    %v2769 = vsel %vm2745, %v2693, 0.0
    %v2770 = vadd.f32 %v2768, %v2769
    %v2771 = vsel %vm2745, %v2694, 0.0
    %v2772 = vadd.f32 %v2770, %v2771
    %v2773 = vsel %vm2745, %v2695, 0.0
    %v2774 = vadd.f32 %v2772, %v2773
    %v2775 = vsel %vm2745, %v2696, 0.0
    %v2776 = vadd.f32 %v2774, %v2775
    %v2777 = vsel %vm2745, %v2697, 0.0
    %v2778 = vadd.f32 %v2776, %v2777
    %v2779 = vsel %vm2745, %v2698, 0.0
    %v2780 = vadd.f32 %v2778, %v2779
    %v2781 = vsel %vm2745, %v2699, 0.0
    %v2782 = vadd.f32 %v2780, %v2781
    %v2783 = vsel %vm2745, %v2700, 0.0
    %v2784 = vadd.f32 %v2782, %v2783
    %v2785 = vsel %vm2745, %v2701, 0.0
    %v2786 = vadd.f32 %v2784, %v2785
    %v2787 = vsel %vm2745, %v2702, 0.0
    %v2788 = vadd.f32 %v2786, %v2787
    %v2789 = vsel %vm2745, %v2703, 0.0
    %v2790 = vadd.f32 %v2788, %v2789
    %v2791 = vsel %vm2745, %v2704, 0.0
    %v2792 = vadd.f32 %v2790, %v2791
    %v2793 = vsel %vm2745, %v2705, 0.0
    %v2794 = vadd.f32 %v2792, %v2793
    %v2795 = vsel %vm2745, %v2706, 0.0
    %v2796 = vadd.f32 %v2794, %v2795
    %v2797 = vsel %vm2745, %v2707, 0.0
    %v2798 = vadd.f32 %v2796, %v2797
    %v2799 = vsel %vm2745, %v2708, 0.0
    %v2800 = vadd.f32 %v2798, %v2799
    %v2801 = vsel %vm2745, %v2709, 0.0
    %v2802 = vadd.f32 %v2800, %v2801
    %v2803 = vsel %vm2745, %v2710, 0.0
    %v2804 = vadd.f32 %v2802, %v2803
    %v2805 = vsel %vm2745, %v2711, 0.0
    %v2806 = vadd.f32 %v2804, %v2805
    %v2807 = vsel %vm2745, %v2712, 0.0
    %v2808 = vadd.f32 %v2806, %v2807
    %v2809 = vsel %vm2745, %v2713, 0.0
    %v2810 = vadd.f32 %v2808, %v2809
    %v2811 = vsel %vm2745, %v2714, 0.0
    %v2812 = vadd.f32 %v2810, %v2811
    %v2813 = vsel %vm2745, %v2715, 0.0
    %v2814 = vadd.f32 %v2812, %v2813
    %v2815 = vsel %vm2745, %v2716, 0.0
    %v2816 = vadd.f32 %v2814, %v2815
    %v2817 = vsel %vm2745, %v2717, 0.0
    %v2818 = vadd.f32 %v2816, %v2817
    %v2819 = vsel %vm2745, %v2718, 0.0
    %v2820 = vadd.f32 %v2818, %v2819
    %v2821 = vsel %vm2745, %v2719, 0.0
    %v2822 = vadd.f32 %v2820, %v2821
    %v2823 = vsel %vm2745, %v2720, 0.0
    %v2824 = vadd.f32 %v2822, %v2823
    %v2825 = vsel %vm2745, %v2721, 0.0
    %v2826 = vadd.f32 %v2824, %v2825
    %v2827 = vsel %vm2745, %v2722, 0.0
    %v2828 = vadd.f32 %v2826, %v2827
    %v2829 = vsel %vm2745, %v2723, 0.0
    %v2830 = vadd.f32 %v2828, %v2829
    %v2831 = vsel %vm2745, %v2724, 0.0
    %v2832 = vadd.f32 %v2830, %v2831
    %v2833 = vsel %vm2745, %v2725, 0.0
    %v2834 = vadd.f32 %v2832, %v2833
    %v2835 = vsel %vm2745, %v2726, 0.0
    %v2836 = vadd.f32 %v2834, %v2835
    %v2837 = vsel %vm2745, %v2727, 0.0
    %v2838 = vadd.f32 %v2836, %v2837
    %v2839 = vsel %vm2745, %v2728, 0.0
    %v2840 = vadd.f32 %v2838, %v2839
    %v2841 = vsel %vm2745, %v2729, 0.0
    %v2842 = vadd.f32 %v2840, %v2841
    %v2843 = vsel %vm2745, %v2730, 0.0
    %v2844 = vadd.f32 %v2842, %v2843
    %v2845 = vsel %vm2745, %v2731, 0.0
    %v2846 = vadd.f32 %v2844, %v2845
    %v2847 = vsel %vm2745, %v2732, 0.0
    %v2848 = vadd.f32 %v2846, %v2847
    %v2849 = vsel %vm2745, %v2733, 0.0
    %v2850 = vadd.f32 %v2848, %v2849
    %v2851 = vsel %vm2745, %v2734, 0.0
    %v2852 = vadd.f32 %v2850, %v2851
    %v2853 = vsel %vm2745, %v2735, 0.0
    %v2854 = vadd.f32 %v2852, %v2853
    %v2855 = vsel %vm2745, %v2736, 0.0
    %v2856 = vadd.f32 %v2854, %v2855
    %v2857 = vsel %vm2745, %v2737, 0.0
    %v2858 = vadd.f32 %v2856, %v2857
    %v2859 = vsel %vm2745, %v2738, 0.0
    %v2860 = vadd.f32 %v2858, %v2859
    %v2861 = vsel %vm2745, %v2739, 0.0
    %v2862 = vadd.f32 %v2860, %v2861
    %v2863 = vsel %vm2745, %v2740, 0.0
    %v2864 = vadd.f32 %v2862, %v2863
    %v2865 = vsel %vm2745, %v2741, 0.0
    %v2866 = vadd.f32 %v2864, %v2865
    %v2867 = vsel %vm2745, %v2742, 0.0
    %v2868 = vadd.f32 %v2866, %v2867
    %v2869 = vsel %vm2745, %v2743, 0.0
    %v2870 = vadd.f32 %v2868, %v2869
    %v2871 = vsel %vm2745, %v2744, 0.0
    %v2872 = vadd.f32 %v2870, %v2871
    %2873 = vadd.xlane.f32.xlu0 %v2872
    %v2874 = vpop.xlane.xlu0 %2873
    %v2875 = vrot.slane %v2874, 4
    %v2876 = vadd.f32 %v2874, %v2875
    %v2877 = vrot.slane %v2876, 2
    %v2878 = vadd.f32 %v2876, %v2877
    %v2879 = vrot.slane %v2878, 1
    %v2880 = vadd.f32 %v2878, %v2879
    %s2881 = vtos %v2880
    %p2882 = scmp.eq.s32.totalorder 0, 0
    // Predicated region
    $region18: #{contrast_loss_pallas.1} parent=1 // pred_check
      %p2883 = pneg %p2882
    $region19: #{contrast_loss_pallas.1} parent=1 // pred_check_branch
      %2885 = sbr.rel (%p2883) target = $region21
    $region20: #{contrast_loss_pallas.1} parent=1 // pred_region
      %s2886 = scalar_lea.smem [#allocation2], 0
      %2887 = sst [smem:[%s2886]] 0.0
    $region21: #{contrast_loss_pallas.1} parent=1 // pred_fallthru
      _
    %s2888 = sld [smem:[#allocation2]]
    %s2889 = sadd.f32 %s2888, %s2881
    %s2890 = scalar_lea.smem [#allocation2], 0
    %2891 = sst [smem:[%s2890]] %s2889
    // Predicated region
    $region22: #{contrast_loss_pallas.1} parent=1 // pred_check
      _
    $region23: #{contrast_loss_pallas.1} parent=1 // pred_check_branch
      %2893 = sbr.rel (0) target = $region25
    $region24: #{contrast_loss_pallas.1} parent=1 // pred_region
      %2895 = vsyncadd [#allocation3], 0
      %s2897 = sshll.u32 %s4, 4
      %s2898 = int_to_ptr.hbm [resolvable:$true] %s2897
      %2900 = dma.smem_to_hbm [#allocation2], 16, %s2898, [#allocation3]
    $region25: #{contrast_loss_pallas.1} parent=1 // pred_fallthru
      _
    // Predicated region
    $region26: #{contrast_loss_pallas.1} parent=1 // pred_check
      _
    $region27: #{contrast_loss_pallas.1} parent=1 // pred_check_branch
      %2902 = sbr.rel (0) target = $region29
    $region28: #{contrast_loss_pallas.1} parent=1 // pred_region
      %2904 = dma.done [#allocation3], 16
    $region29: #{contrast_loss_pallas.1} parent=1 // pred_fallthru
      _
    %2905 = sfence
    %2906 = vsyncpa [#allocation3], 1

</llo_original>
